<compile_context>
chip_gen: v7x
topology: tpu7x:2x2x1
jax: 0.10.0
libtpu: 0.0.40
codegen_flags: <defaults>
</compile_context>

<pallas_src>
import math
import functools

import jax
import jax.numpy as jnp
from jax import lax
from jax.experimental import pallas as pl
from jax.experimental.pallas import tpu as pltpu

MASK_FILL = -1e32
LN_EPS = 1e-5
# clamp(exp(x), 1e-5, 1e5) with x = dist * (-softplus(gamma)) <= 0  ==>  only
# the lower bound can trigger: exp(max(x, log 1e-5)).
LOG_CLIP_MIN = math.log(1e-5)


def _inclusive_cumsum_lastdim(x):
    """Inclusive cumulative sum along the last (lane) axis.

    Hillis-Steele scan built from static zero-padded shifts (concatenate +
    static slices), so it lowers cleanly in Mosaic and runs on VPU/XLU slots
    instead of burning the MXU on a (tq,S)x(S,S) matmul.
    """
    rows, n = x.shape
    shift = 1
    while shift < n:
        shifted = jnp.concatenate(
            [jnp.zeros((rows, shift), x.dtype), x[:, : n - shift]], axis=1)
        x = x + shifted
        shift *= 2
    return x


# ----------------------------- fused Pallas kernel -----------------------------

def _dtransformer_kernel(gamma_ref,                      # (H,) f32 SMEM: -softplus(gamma_h)
                         q_in_ref, k_in_ref, v_in_ref,   # (1,tq,D) / (1,S,D) / (1,S,D) f32
                         wq_ref, bq_ref,                 # (D, D) bf16, (1, D) f32
                         wv_ref, bv_ref,                 # (D, D) bf16, (1, D) f32
                         wo_ref, bo_ref,                 # (D, D) bf16, (1, D) f32
                         lnw_ref, lnb_ref,               # (1, D) f32, (1, D) f32
                         o_ref,                          # (1, tq, D) f32
                         k_proj_ref, v_proj_ref,         # VMEM scratch (S, D) bf16
                         *, n_heads, d_k, seq_len, tq,
                         causal_offset, skip_offset, eps):
    S = seq_len
    t = pl.program_id(1)
    q0 = t * tq                                          # absolute row offset of this q tile

    # --- K/V projections once per batch (q-tile axis is sequential/"arbitrary",
    #     so t == 0 runs first and the bf16 scratch persists for t > 0) ---
    @pl.when(t == 0)
    def _():
        x_k = k_in_ref[0].astype(jnp.bfloat16)
        x_v = v_in_ref[0].astype(jnp.bfloat16)
        # kq_same=True -> K shares Wq / bq.
        k_proj_ref[...] = (jnp.dot(x_k, wq_ref[...],
                                   preferred_element_type=jnp.float32)
                           + bq_ref[...]).astype(jnp.bfloat16)
        v_proj_ref[...] = (jnp.dot(x_v, wv_ref[...],
                                   preferred_element_type=jnp.float32)
                           + bv_ref[...]).astype(jnp.bfloat16)

    # --- Q projection for this tile (pre-scaled by 1/sqrt(d_k)) ---
    x_q = q_in_ref[0]                                    # (tq, D) f32 raw query (residual)
    inv_sqrt_dk = 1.0 / math.sqrt(d_k)
    q = (jnp.dot(x_q.astype(jnp.bfloat16), wq_ref[...],
                 preferred_element_type=jnp.float32) + bq_ref[...]) * inv_sqrt_dk
    q = q.astype(jnp.bfloat16)                           # MXU operand for scores

    # --- mask / positional terms built in-kernel (no (S,S) mask DMA) ---
    row = q0 + lax.broadcasted_iota(jnp.int32, (tq, S), 0)
    col = lax.broadcasted_iota(jnp.int32, (tq, S), 1)
    keep = (col <= row - causal_offset) & (col != row - skip_offset)
    bias = jnp.where(keep, 0.0, MASK_FILL)               # additive mask, f32
    pos_eff = jnp.abs(col - row).astype(jnp.float32)     # |i - j|

    head_outs = []
    for h in range(n_heads):
        sl = slice(h * d_k, (h + 1) * d_k)
        qh = q[:, sl]                                    # (tq, Dk) bf16, 1/sqrt(dk)-scaled
        kh = k_proj_ref[:, sl]                           # (S, Dk)  bf16
        vh = v_proj_ref[:, sl]                           # (S, Dk)  bf16

        scores = lax.dot_general(qh, kh, (((1,), (1,)), ((), ())),
                                 preferred_element_type=jnp.float32)   # (tq, S) f32

        # ---- distance-decay term (no-grad block in the reference) ----
        s1 = scores + bias
        m1 = jnp.max(s1, axis=-1, keepdims=True)
        e1 = jnp.exp(s1 - m1)
        p1 = e1 * pl.reciprocal(jnp.sum(e1, axis=-1, keepdims=True), approx=True)
        # disttotal - distcum  ==  reverse exclusive cumsum of p1 (lane scan,
        # replaces the old (tq,S)x(S,S) MXU matmul + rev_mat buffer).
        rev_cum = (jnp.sum(p1, axis=-1, keepdims=True)
                   - _inclusive_cumsum_lastdim(p1))
        dist = jnp.sqrt(jnp.maximum(rev_cum * pos_eff, 0.0))
        decay = jnp.exp(jnp.maximum(dist * gamma_ref[h], LOG_CLIP_MIN))

        # ---- final masked softmax + weighted sum ----
        s2 = scores * decay + bias
        m2 = jnp.max(s2, axis=-1, keepdims=True)
        e2 = jnp.exp(s2 - m2)
        p2 = e2 * pl.reciprocal(jnp.sum(e2, axis=-1, keepdims=True), approx=True)
        p2 = jnp.where(keep, p2, 0.0)                    # zero masked entries (matches ref)

        head_outs.append(jnp.dot(p2.astype(jnp.bfloat16), vh,
                                 preferred_element_type=jnp.float32))  # (tq, Dk) f32

    # --- single out_proj matmul on the concatenated heads ---
    attn = jnp.concatenate(head_outs, axis=-1)           # (tq, D) f32
    proj = jnp.dot(attn.astype(jnp.bfloat16), wo_ref[...],
                   preferred_element_type=jnp.float32) + bo_ref[...]

    # --- residual add (dropout identity in eval) + LayerNorm, fused ---
    hid = x_q + proj
    mean = jnp.mean(hid, axis=-1, keepdims=True)
    var = jnp.mean(jnp.square(hid - mean), axis=-1, keepdims=True)
    normed = (hid - mean) * lax.rsqrt(var + eps)
    o_ref[0] = (normed * lnw_ref[...] + lnb_ref[...]).astype(o_ref.dtype)


# ----------------------------- wrapper ------------------------------------------

def _vmem_limit_bytes():
    # Scoped VMEM defaults (16/32 MiB) are far below physical; raise the limit
    # explicitly, leaving headroom below each generation's capacity
    # (v5e/v6e: 128 MiB -> ~100 MiB, v7x: 64 MiB -> ~56 MiB).
    try:
        cap = int(getattr(pltpu.get_tpu_info(), "vmem_capacity_bytes", 0))
    except Exception:
        cap = 0
    if cap <= 0:
        cap = 64 * 1024 * 1024
    return max(32 * 1024 * 1024, min(cap - 8 * 1024 * 1024, 100 * 1024 * 1024))


def _const_spec(shape):
    # Grid-invariant operand: single-buffered (index never changes, so no
    # prefetch is needed and double-buffering would only waste VMEM).
    return pl.BlockSpec(shape, lambda b, t: (0, 0), pipeline_mode=pl.Buffered(1))


def dtransformer_layer_forward(params, query, key, values, lens=None,
                               peek_cur=False, n=1, block_q=128):
    """Eval-mode forward of DTransformerLayer as a single fused Pallas call."""
    del lens  # only consumed by training-mode stochastic mask dropout (not implemented)
    B, S, D = query.shape
    H = params["n_heads"]
    Dk = D // H

    # query-row tile size: full S for short sequences, bounded for long ones.
    tq = S if S <= block_q else block_q
    assert S % tq == 0, "seq_len must be divisible by the query tile size"
    num_qt = S // tq

    # gamma -> -softplus(gamma) per head, delivered to the kernel via SMEM.
    neg_sp_gamma = (-jnp.logaddexp(0.0, params["gammas"])).astype(jnp.float32)  # (H,)

    # Weights feed MXU matmuls -> ship them bf16 (halves DMA/VMEM, ~2-4x MXU).
    wq = params["Wq"].astype(jnp.bfloat16)
    wv = params["Wv"].astype(jnp.bfloat16)
    wo = params["Wo"].astype(jnp.bfloat16)
    bq = params["bq"].reshape(1, D).astype(jnp.float32)
    bv = params["bv"].reshape(1, D).astype(jnp.float32)
    bo = params["bo"].reshape(1, D).astype(jnp.float32)
    ln_w = params["ln_w"].reshape(1, D).astype(jnp.float32)
    ln_b = params["ln_b"].reshape(1, D).astype(jnp.float32)

    kernel = functools.partial(
        _dtransformer_kernel,
        n_heads=H, d_k=Dk, seq_len=S, tq=tq,
        causal_offset=0 if peek_cur else 1, skip_offset=n - 1, eps=LN_EPS)

    return pl.pallas_call(
        kernel,
        out_shape=jax.ShapeDtypeStruct((B, S, D), jnp.float32),
        grid_spec=pltpu.PrefetchScalarGridSpec(
            num_scalar_prefetch=0,
            grid=(B, num_qt),
            in_specs=[
                pl.BlockSpec(memory_space=pltpu.MemorySpace.SMEM),     # gammas (H,)
                pl.BlockSpec((1, tq, D), lambda b, t: (b, t, 0)),      # query tile
                pl.BlockSpec((1, S, D), lambda b, t: (b, 0, 0)),       # key (full, per b)
                pl.BlockSpec((1, S, D), lambda b, t: (b, 0, 0)),       # values (full, per b)
                _const_spec((D, D)),                                   # Wq (bf16)
                _const_spec((1, D)),                                   # bq
                _const_spec((D, D)),                                   # Wv (bf16)
                _const_spec((1, D)),                                   # bv
                _const_spec((D, D)),                                   # Wo (bf16)
                _const_spec((1, D)),                                   # bo
                _const_spec((1, D)),                                   # ln_w
                _const_spec((1, D)),                                   # ln_b
            ],
            out_specs=pl.BlockSpec((1, tq, D), lambda b, t: (b, t, 0)),
            scratch_shapes=[
                pltpu.VMEM((S, D), jnp.bfloat16),   # projected K, persists across q tiles
                pltpu.VMEM((S, D), jnp.bfloat16),   # projected V, persists across q tiles
            ],
        ),
        compiler_params=pltpu.CompilerParams(
            # q-tile axis must be sequential ("arbitrary") so the K/V projections
            # computed at t == 0 persist for t > 0; megacore parallelism comes
            # from the batch axis.
            dimension_semantics=("parallel", "arbitrary"),
            vmem_limit_bytes=_vmem_limit_bytes()),
    )(neg_sp_gamma, query, key, values, wq, bq, wv, bv, wo, bo, ln_w, ln_b)


# ----------------------------- param init (matches PyTorch defaults) ------------

def init_params(key, d_model, n_heads):
    ks = jax.random.split(key, 7)
    bound = 1.0 / math.sqrt(d_model)

    def lin_w(k):
        return jax.random.uniform(k, (d_model, d_model), jnp.float32, -bound, bound)

    def lin_b(k):
        return jax.random.uniform(k, (d_model,), jnp.float32, -bound, bound)

    gb = math.sqrt(6.0 / (1.0 + n_heads))  # xavier_uniform bound for (H, 1, 1)
    return {
        "n_heads": n_heads,
        "Wq": lin_w(ks[0]), "bq": lin_b(ks[1]),      # kq_same=True -> K shares these
        "Wv": lin_w(ks[2]), "bv": lin_b(ks[3]),
        "Wo": lin_w(ks[4]), "bo": lin_b(ks[5]),
        "gammas": jax.random.uniform(ks[6], (n_heads,), jnp.float32, -gb, gb),
        "ln_w": jnp.ones((d_model,), jnp.float32),
        "ln_b": jnp.zeros((d_model,), jnp.float32),
    }


if __name__ == "__main__":
    B, S, D, H = 2, 8, 32, 4
    root = jax.random.PRNGKey(0)
    kp, kq, kk, kv = jax.random.split(root, 4)

    params = init_params(kp, D, H)
    query = jax.random.normal(kq, (B, S, D), jnp.float32)
    key_in = jax.random.normal(kk, (B, S, D), jnp.float32)
    values = jax.random.normal(kv, (B, S, D), jnp.float32)
    lens = jnp.array([S, S], jnp.int32)  # unused in eval mode

    out = dtransformer_layer_forward(params, query, key_in, values, lens,
                                     peek_cur=False, n=1)
    out = jax.block_until_ready(out)
    assert out.shape == (B, S, D)
    assert bool(jnp.all(jnp.isfinite(out)))
    print("KERNEL_OK")
</pallas_src>

<mosaic_0001>
module attributes {stable_mosaic.version = 11 : i64} {
  func.func @_dtransformer_kernel(%arg0: i32, %arg1: i32, %arg2: memref<4xf32, #tpu.memory_space<smem>>, %arg3: memref<1x8x32xf32, #tpu.memory_space<vmem>>, %arg4: memref<1x8x32xf32, #tpu.memory_space<vmem>>, %arg5: memref<1x8x32xf32, #tpu.memory_space<vmem>>, %arg6: memref<32x32xbf16, #tpu.memory_space<vmem>>, %arg7: memref<1x32xf32, #tpu.memory_space<vmem>>, %arg8: memref<32x32xbf16, #tpu.memory_space<vmem>>, %arg9: memref<1x32xf32, #tpu.memory_space<vmem>>, %arg10: memref<32x32xbf16, #tpu.memory_space<vmem>>, %arg11: memref<1x32xf32, #tpu.memory_space<vmem>>, %arg12: memref<1x32xf32, #tpu.memory_space<vmem>>, %arg13: memref<1x32xf32, #tpu.memory_space<vmem>>, %arg14: memref<1x8x32xf32, #tpu.memory_space<vmem>>, %arg15: memref<8x32xbf16, #tpu.memory_space<vmem>>, %arg16: memref<8x32xbf16, #tpu.memory_space<vmem>>) attributes {dimension_semantics = [#tpu.dimension_semantics<parallel>, #tpu.dimension_semantics<arbitrary>], iteration_bounds = array<i64: 2, 1>, scalar_prefetch = 0 : i64, scratch_operands = 2 : i64, tpu.core_type = #tpu.core_type<tc>, window_params = [{transform_indices = @transform_0, window_bounds = array<i64: 4>}, {transform_indices = @transform_1, window_bounds = array<i64: 1, 8, 32>}, {transform_indices = @transform_2, window_bounds = array<i64: 1, 8, 32>}, {transform_indices = @transform_3, window_bounds = array<i64: 1, 8, 32>}, {pipeline_mode = #tpu.pipeline_mode<synchronous>, transform_indices = @transform_4, window_bounds = array<i64: 32, 32>}, {pipeline_mode = #tpu.pipeline_mode<synchronous>, transform_indices = @transform_5, window_bounds = array<i64: 1, 32>}, {pipeline_mode = #tpu.pipeline_mode<synchronous>, transform_indices = @transform_6, window_bounds = array<i64: 32, 32>}, {pipeline_mode = #tpu.pipeline_mode<synchronous>, transform_indices = @transform_7, window_bounds = array<i64: 1, 32>}, {pipeline_mode = #tpu.pipeline_mode<synchronous>, transform_indices = @transform_8, window_bounds = array<i64: 32, 32>}, {pipeline_mode = #tpu.pipeline_mode<synchronous>, transform_indices = @transform_9, window_bounds = array<i64: 1, 32>}, {pipeline_mode = #tpu.pipeline_mode<synchronous>, transform_indices = @transform_10, window_bounds = array<i64: 1, 32>}, {pipeline_mode = #tpu.pipeline_mode<synchronous>, transform_indices = @transform_11, window_bounds = array<i64: 1, 32>}, {transform_indices = @transform_12, window_bounds = array<i64: 1, 8, 32>}]} {
    %c8_i32 = arith.constant 8 : i32
    %0 = arith.muli %arg1, %c8_i32 : i32
    %c0_i32 = arith.constant 0 : i32
    %1 = arith.cmpi eq, %arg1, %c0_i32 : i32
    %2 = arith.extui %1 : i1 to i32
    %c0_i32_0 = arith.constant 0 : i32
    %3 = arith.cmpi ne, %2, %c0_i32_0 : i32
    scf.if %3 {
      %c0_94 = arith.constant 0 : index
      %c0_95 = arith.constant 0 : index
      %c0_96 = arith.constant 0 : index
      %295 = vector.load %arg4[%c0_94, %c0_95, %c0_96] : memref<1x8x32xf32, #tpu.memory_space<vmem>>, vector<1x8x32xf32>
      %296 = vector.shape_cast %295 : vector<1x8x32xf32> to vector<8x32xf32>
      %297 = arith.truncf %296 : vector<8x32xf32> to vector<8x32xbf16>
      %c0_97 = arith.constant 0 : index
      %c0_98 = arith.constant 0 : index
      %c0_99 = arith.constant 0 : index
      %298 = vector.load %arg5[%c0_97, %c0_98, %c0_99] : memref<1x8x32xf32, #tpu.memory_space<vmem>>, vector<1x8x32xf32>
      %299 = vector.shape_cast %298 : vector<1x8x32xf32> to vector<8x32xf32>
      %300 = arith.truncf %299 : vector<8x32xf32> to vector<8x32xbf16>
      %c0_100 = arith.constant 0 : index
      %c0_101 = arith.constant 0 : index
      %301 = vector.load %arg6[%c0_100, %c0_101] : memref<32x32xbf16, #tpu.memory_space<vmem>>, vector<32x32xbf16>
      %cst_102 = arith.constant dense<0.000000e+00> : vector<8x32xf32>
      %302 = tpu.matmul %297, %301, %cst_102 {dimension_numbers = #tpu.dot_dimension_numbers<[1], [0], [0], [1], [0, 0, 1, 1], [], []>} : vector<8x32xbf16>, vector<32x32xbf16>, vector<8x32xf32> -> vector<8x32xf32>
      %c0_103 = arith.constant 0 : index
      %c0_104 = arith.constant 0 : index
      %303 = vector.load %arg7[%c0_103, %c0_104] : memref<1x32xf32, #tpu.memory_space<vmem>>, vector<1x32xf32>
      %304 = vector.broadcast %303 : vector<1x32xf32> to vector<8x32xf32>
      %305 = arith.addf %302, %304 : vector<8x32xf32>
      %306 = arith.truncf %305 : vector<8x32xf32> to vector<8x32xbf16>
      %c0_105 = arith.constant 0 : index
      %c0_106 = arith.constant 0 : index
      %307 = vector.load %arg15[%c0_105, %c0_106] : memref<8x32xbf16, #tpu.memory_space<vmem>>, vector<8x32xbf16>
      tpu.vector_store %arg15[%c0_105, %c0_106], %306 {strides = array<i32>} : memref<8x32xbf16, #tpu.memory_space<vmem>>, vector<8x32xbf16>,
      %c0_107 = arith.constant 0 : index
      %c0_108 = arith.constant 0 : index
      %308 = vector.load %arg8[%c0_107, %c0_108] : memref<32x32xbf16, #tpu.memory_space<vmem>>, vector<32x32xbf16>
      %cst_109 = arith.constant dense<0.000000e+00> : vector<8x32xf32>
      %309 = tpu.matmul %300, %308, %cst_109 {dimension_numbers = #tpu.dot_dimension_numbers<[1], [0], [0], [1], [0, 0, 1, 1], [], []>} : vector<8x32xbf16>, vector<32x32xbf16>, vector<8x32xf32> -> vector<8x32xf32>
      %c0_110 = arith.constant 0 : index
      %c0_111 = arith.constant 0 : index
      %310 = vector.load %arg9[%c0_110, %c0_111] : memref<1x32xf32, #tpu.memory_space<vmem>>, vector<1x32xf32>
      %311 = vector.broadcast %310 : vector<1x32xf32> to vector<8x32xf32>
      %312 = arith.addf %309, %311 : vector<8x32xf32>
      %313 = arith.truncf %312 : vector<8x32xf32> to vector<8x32xbf16>
      %c0_112 = arith.constant 0 : index
      %c0_113 = arith.constant 0 : index
      %314 = vector.load %arg16[%c0_112, %c0_113] : memref<8x32xbf16, #tpu.memory_space<vmem>>, vector<8x32xbf16>
      tpu.vector_store %arg16[%c0_112, %c0_113], %313 {strides = array<i32>} : memref<8x32xbf16, #tpu.memory_space<vmem>>, vector<8x32xbf16>,
    } else {
    }
    %c0 = arith.constant 0 : index
    %c0_1 = arith.constant 0 : index
    %c0_2 = arith.constant 0 : index
    %4 = vector.load %arg3[%c0, %c0_1, %c0_2] : memref<1x8x32xf32, #tpu.memory_space<vmem>>, vector<1x8x32xf32>
    %5 = vector.shape_cast %4 : vector<1x8x32xf32> to vector<8x32xf32>
    %6 = arith.truncf %5 : vector<8x32xf32> to vector<8x32xbf16>
    %c0_3 = arith.constant 0 : index
    %c0_4 = arith.constant 0 : index
    %7 = vector.load %arg6[%c0_3, %c0_4] : memref<32x32xbf16, #tpu.memory_space<vmem>>, vector<32x32xbf16>
    %cst = arith.constant dense<0.000000e+00> : vector<8x32xf32>
    %8 = tpu.matmul %6, %7, %cst {dimension_numbers = #tpu.dot_dimension_numbers<[1], [0], [0], [1], [0, 0, 1, 1], [], []>} : vector<8x32xbf16>, vector<32x32xbf16>, vector<8x32xf32> -> vector<8x32xf32>
    %c0_5 = arith.constant 0 : index
    %c0_6 = arith.constant 0 : index
    %9 = vector.load %arg7[%c0_5, %c0_6] : memref<1x32xf32, #tpu.memory_space<vmem>>, vector<1x32xf32>
    %10 = vector.broadcast %9 : vector<1x32xf32> to vector<8x32xf32>
    %11 = arith.addf %8, %10 : vector<8x32xf32>
    %cst_7 = arith.constant 0.353553385 : f32
    %12 = vector.broadcast %cst_7 : f32 to vector<8x32xf32>
    %13 = arith.mulf %11, %12 : vector<8x32xf32>
    %14 = arith.truncf %13 : vector<8x32xf32> to vector<8x32xbf16>
    %15 = tpu.iota {dimensions = array<i32: 0>} : vector<8x8xi32>
    %16 = vector.broadcast %0 : i32 to vector<8x8xi32>
    %17 = arith.addi %16, %15 : vector<8x8xi32>
    %18 = tpu.iota {dimensions = array<i32: 1>} : vector<8x8xi32>
    %c1_i32 = arith.constant 1 : i32
    %19 = vector.broadcast %c1_i32 : i32 to vector<8x8xi32>
    %20 = arith.subi %17, %19 : vector<8x8xi32>
    %21 = arith.cmpi sle, %18, %20 : vector<8x8xi32>
    %c0_i32_8 = arith.constant 0 : i32
    %22 = vector.broadcast %c0_i32_8 : i32 to vector<8x8xi32>
    %23 = arith.subi %17, %22 : vector<8x8xi32>
    %24 = arith.cmpi ne, %18, %23 : vector<8x8xi32>
    %25 = arith.andi %21, %24 : vector<8x8xi1>
    %cst_9 = arith.constant 0.000000e+00 : f32
    %cst_10 = arith.constant -1.000000e+32 : f32
    %26 = vector.broadcast %cst_9 : f32 to vector<8x8xf32>
    %27 = vector.broadcast %cst_10 : f32 to vector<8x8xf32>
    %28 = arith.select %25, %26, %27 : vector<8x8xi1>, vector<8x8xf32>
    %29 = arith.subi %18, %17 : vector<8x8xi32>
    %30 = math.absi %29 : vector<8x8xi32>
    %31 = arith.sitofp %30 : vector<8x8xi32> to vector<8x8xf32>
    %32 = vector.extract_strided_slice %14 {offsets = [0, 0], sizes = [8, 8], strides = [1, 1]} : vector<8x32xbf16> to vector<8x8xbf16>
    %c0_11 = arith.constant 0 : index
    %c0_12 = arith.constant 0 : index
    %33 = vector.load %arg15[%c0_11, %c0_12] : memref<8x32xbf16, #tpu.memory_space<vmem>>, vector<8x8xbf16>
    %c0_13 = arith.constant 0 : index
    %c0_14 = arith.constant 0 : index
    %34 = vector.load %arg16[%c0_13, %c0_14] : memref<8x32xbf16, #tpu.memory_space<vmem>>, vector<8x8xbf16>
    %cst_15 = arith.constant dense<0.000000e+00> : vector<8x8xf32>
    %35 = tpu.matmul %32, %33, %cst_15 {dimension_numbers = #tpu.dot_dimension_numbers<[1], [1], [0], [0], [0, 0, 1, 0], [], []>} : vector<8x8xbf16>, vector<8x8xbf16>, vector<8x8xf32> -> vector<8x8xf32>
    %36 = arith.addf %35, %28 : vector<8x8xf32>
    %cst_16 = arith.constant dense<0xFF800000> : vector<8xf32>
    %37 = vector.multi_reduction <maximumf>, %36, %cst_16 [1] : vector<8x8xf32> to vector<8xf32>
    %38 = vector.shape_cast %37 : vector<8xf32> to vector<8x1xf32>
    %39 = vector.broadcast %38 : vector<8x1xf32> to vector<8x8xf32>
    %40 = arith.subf %36, %39 : vector<8x8xf32>
    %41 = math.exp %40 : vector<8x8xf32>
    %cst_17 = arith.constant dense<0.000000e+00> : vector<8xf32>
    %42 = vector.multi_reduction <add>, %41, %cst_17 [1] : vector<8x8xf32> to vector<8xf32>
    %43 = vector.shape_cast %42 : vector<8xf32> to vector<8x1xf32>
    %44 = tpu.reciprocal %43 {approx = true} : vector<8x1xf32> -> vector<8x1xf32>
    %45 = vector.broadcast %44 : vector<8x1xf32> to vector<8x8xf32>
    %46 = arith.mulf %41, %45 : vector<8x8xf32>
    %cst_18 = arith.constant dense<0.000000e+00> : vector<8xf32>
    %47 = vector.multi_reduction <add>, %46, %cst_18 [1] : vector<8x8xf32> to vector<8xf32>
    %48 = vector.shape_cast %47 : vector<8xf32> to vector<8x1xf32>
    %cst_19 = arith.constant 0.000000e+00 : f32
    %49 = vector.broadcast %cst_19 : f32 to vector<8x1xf32>
    %50 = vector.extract_strided_slice %46 {offsets = [0, 0], sizes = [8, 7], strides = [1, 1]} : vector<8x8xf32> to vector<8x7xf32>
    %51 = tpu.concatenate %49, %50 in 1 : vector<8x1xf32>, vector<8x7xf32> -> vector<8x8xf32>
    %52 = arith.addf %46, %51 : vector<8x8xf32>
    %cst_20 = arith.constant 0.000000e+00 : f32
    %53 = vector.broadcast %cst_20 : f32 to vector<8x2xf32>
    %54 = vector.extract_strided_slice %52 {offsets = [0, 0], sizes = [8, 6], strides = [1, 1]} : vector<8x8xf32> to vector<8x6xf32>
    %55 = tpu.concatenate %53, %54 in 1 : vector<8x2xf32>, vector<8x6xf32> -> vector<8x8xf32>
    %56 = arith.addf %52, %55 : vector<8x8xf32>
    %cst_21 = arith.constant 0.000000e+00 : f32
    %57 = vector.broadcast %cst_21 : f32 to vector<8x4xf32>
    %58 = vector.extract_strided_slice %56 {offsets = [0, 0], sizes = [8, 4], strides = [1, 1]} : vector<8x8xf32> to vector<8x4xf32>
    %59 = tpu.concatenate %57, %58 in 1 : vector<8x4xf32>, vector<8x4xf32> -> vector<8x8xf32>
    %60 = arith.addf %56, %59 : vector<8x8xf32>
    %61 = vector.broadcast %48 : vector<8x1xf32> to vector<8x8xf32>
    %62 = arith.subf %61, %60 : vector<8x8xf32>
    %63 = arith.mulf %62, %31 : vector<8x8xf32>
    %cst_22 = arith.constant 0.000000e+00 : f32
    %64 = vector.broadcast %cst_22 : f32 to vector<8x8xf32>
    %65 = arith.maximumf %63, %64 : vector<8x8xf32>
    %66 = math.sqrt %65 : vector<8x8xf32>
    %c0_23 = arith.constant 0 : index
    %67 = memref.load %arg2[%c0_23] : memref<4xf32, #tpu.memory_space<smem>>
    %68 = vector.broadcast %67 : f32 to vector<8x8xf32>
    %69 = arith.mulf %66, %68 : vector<8x8xf32>
    %cst_24 = arith.constant -11.5129251 : f32
    %70 = vector.broadcast %cst_24 : f32 to vector<8x8xf32>
    %71 = arith.maximumf %69, %70 : vector<8x8xf32>
    %72 = math.exp %71 : vector<8x8xf32>
    %73 = arith.mulf %35, %72 : vector<8x8xf32>
    %74 = arith.addf %73, %28 : vector<8x8xf32>
    %cst_25 = arith.constant dense<0xFF800000> : vector<8xf32>
    %75 = vector.multi_reduction <maximumf>, %74, %cst_25 [1] : vector<8x8xf32> to vector<8xf32>
    %76 = vector.shape_cast %75 : vector<8xf32> to vector<8x1xf32>
    %77 = vector.broadcast %76 : vector<8x1xf32> to vector<8x8xf32>
    %78 = arith.subf %74, %77 : vector<8x8xf32>
    %79 = math.exp %78 : vector<8x8xf32>
    %cst_26 = arith.constant dense<0.000000e+00> : vector<8xf32>
    %80 = vector.multi_reduction <add>, %79, %cst_26 [1] : vector<8x8xf32> to vector<8xf32>
    %81 = vector.shape_cast %80 : vector<8xf32> to vector<8x1xf32>
    %82 = tpu.reciprocal %81 {approx = true} : vector<8x1xf32> -> vector<8x1xf32>
    %83 = vector.broadcast %82 : vector<8x1xf32> to vector<8x8xf32>
    %84 = arith.mulf %79, %83 : vector<8x8xf32>
    %cst_27 = arith.constant 0.000000e+00 : f32
    %85 = vector.broadcast %cst_27 : f32 to vector<8x8xf32>
    %86 = arith.select %25, %84, %85 : vector<8x8xi1>, vector<8x8xf32>
    %87 = arith.truncf %86 : vector<8x8xf32> to vector<8x8xbf16>
    %cst_28 = arith.constant dense<0.000000e+00> : vector<8x8xf32>
    %88 = tpu.matmul %87, %34, %cst_28 {dimension_numbers = #tpu.dot_dimension_numbers<[1], [0], [0], [1], [0, 0, 1, 1], [], []>} : vector<8x8xbf16>, vector<8x8xbf16>, vector<8x8xf32> -> vector<8x8xf32>
    %89 = vector.extract_strided_slice %14 {offsets = [0, 8], sizes = [8, 8], strides = [1, 1]} : vector<8x32xbf16> to vector<8x8xbf16>
    %c0_29 = arith.constant 0 : index
    %c8 = arith.constant 8 : index
    %90 = vector.load %arg15[%c0_29, %c8] : memref<8x32xbf16, #tpu.memory_space<vmem>>, vector<8x8xbf16>
    %c0_30 = arith.constant 0 : index
    %c8_31 = arith.constant 8 : index
    %91 = vector.load %arg16[%c0_30, %c8_31] : memref<8x32xbf16, #tpu.memory_space<vmem>>, vector<8x8xbf16>
    %cst_32 = arith.constant dense<0.000000e+00> : vector<8x8xf32>
    %92 = tpu.matmul %89, %90, %cst_32 {dimension_numbers = #tpu.dot_dimension_numbers<[1], [1], [0], [0], [0, 0, 1, 0], [], []>} : vector<8x8xbf16>, vector<8x8xbf16>, vector<8x8xf32> -> vector<8x8xf32>
    %93 = arith.addf %92, %28 : vector<8x8xf32>
    %cst_33 = arith.constant dense<0xFF800000> : vector<8xf32>
    %94 = vector.multi_reduction <maximumf>, %93, %cst_33 [1] : vector<8x8xf32> to vector<8xf32>
    %95 = vector.shape_cast %94 : vector<8xf32> to vector<8x1xf32>
    %96 = vector.broadcast %95 : vector<8x1xf32> to vector<8x8xf32>
    %97 = arith.subf %93, %96 : vector<8x8xf32>
    %98 = math.exp %97 : vector<8x8xf32>
    %cst_34 = arith.constant dense<0.000000e+00> : vector<8xf32>
    %99 = vector.multi_reduction <add>, %98, %cst_34 [1] : vector<8x8xf32> to vector<8xf32>
    %100 = vector.shape_cast %99 : vector<8xf32> to vector<8x1xf32>
    %101 = tpu.reciprocal %100 {approx = true} : vector<8x1xf32> -> vector<8x1xf32>
    %102 = vector.broadcast %101 : vector<8x1xf32> to vector<8x8xf32>
    %103 = arith.mulf %98, %102 : vector<8x8xf32>
    %cst_35 = arith.constant dense<0.000000e+00> : vector<8xf32>
    %104 = vector.multi_reduction <add>, %103, %cst_35 [1] : vector<8x8xf32> to vector<8xf32>
    %105 = vector.shape_cast %104 : vector<8xf32> to vector<8x1xf32>
    %cst_36 = arith.constant 0.000000e+00 : f32
    %106 = vector.broadcast %cst_36 : f32 to vector<8x1xf32>
    %107 = vector.extract_strided_slice %103 {offsets = [0, 0], sizes = [8, 7], strides = [1, 1]} : vector<8x8xf32> to vector<8x7xf32>
    %108 = tpu.concatenate %106, %107 in 1 : vector<8x1xf32>, vector<8x7xf32> -> vector<8x8xf32>
    %109 = arith.addf %103, %108 : vector<8x8xf32>
    %cst_37 = arith.constant 0.000000e+00 : f32
    %110 = vector.broadcast %cst_37 : f32 to vector<8x2xf32>
    %111 = vector.extract_strided_slice %109 {offsets = [0, 0], sizes = [8, 6], strides = [1, 1]} : vector<8x8xf32> to vector<8x6xf32>
    %112 = tpu.concatenate %110, %111 in 1 : vector<8x2xf32>, vector<8x6xf32> -> vector<8x8xf32>
    %113 = arith.addf %109, %112 : vector<8x8xf32>
    %cst_38 = arith.constant 0.000000e+00 : f32
    %114 = vector.broadcast %cst_38 : f32 to vector<8x4xf32>
    %115 = vector.extract_strided_slice %113 {offsets = [0, 0], sizes = [8, 4], strides = [1, 1]} : vector<8x8xf32> to vector<8x4xf32>
    %116 = tpu.concatenate %114, %115 in 1 : vector<8x4xf32>, vector<8x4xf32> -> vector<8x8xf32>
    %117 = arith.addf %113, %116 : vector<8x8xf32>
    %118 = vector.broadcast %105 : vector<8x1xf32> to vector<8x8xf32>
    %119 = arith.subf %118, %117 : vector<8x8xf32>
    %120 = arith.mulf %119, %31 : vector<8x8xf32>
    %cst_39 = arith.constant 0.000000e+00 : f32
    %121 = vector.broadcast %cst_39 : f32 to vector<8x8xf32>
    %122 = arith.maximumf %120, %121 : vector<8x8xf32>
    %123 = math.sqrt %122 : vector<8x8xf32>
    %c1 = arith.constant 1 : index
    %124 = memref.load %arg2[%c1] : memref<4xf32, #tpu.memory_space<smem>>
    %125 = vector.broadcast %124 : f32 to vector<8x8xf32>
    %126 = arith.mulf %123, %125 : vector<8x8xf32>
    %cst_40 = arith.constant -11.5129251 : f32
    %127 = vector.broadcast %cst_40 : f32 to vector<8x8xf32>
    %128 = arith.maximumf %126, %127 : vector<8x8xf32>
    %129 = math.exp %128 : vector<8x8xf32>
    %130 = arith.mulf %92, %129 : vector<8x8xf32>
    %131 = arith.addf %130, %28 : vector<8x8xf32>
    %cst_41 = arith.constant dense<0xFF800000> : vector<8xf32>
    %132 = vector.multi_reduction <maximumf>, %131, %cst_41 [1] : vector<8x8xf32> to vector<8xf32>
    %133 = vector.shape_cast %132 : vector<8xf32> to vector<8x1xf32>
    %134 = vector.broadcast %133 : vector<8x1xf32> to vector<8x8xf32>
    %135 = arith.subf %131, %134 : vector<8x8xf32>
    %136 = math.exp %135 : vector<8x8xf32>
    %cst_42 = arith.constant dense<0.000000e+00> : vector<8xf32>
    %137 = vector.multi_reduction <add>, %136, %cst_42 [1] : vector<8x8xf32> to vector<8xf32>
    %138 = vector.shape_cast %137 : vector<8xf32> to vector<8x1xf32>
    %139 = tpu.reciprocal %138 {approx = true} : vector<8x1xf32> -> vector<8x1xf32>
    %140 = vector.broadcast %139 : vector<8x1xf32> to vector<8x8xf32>
    %141 = arith.mulf %136, %140 : vector<8x8xf32>
    %cst_43 = arith.constant 0.000000e+00 : f32
    %142 = vector.broadcast %cst_43 : f32 to vector<8x8xf32>
    %143 = arith.select %25, %141, %142 : vector<8x8xi1>, vector<8x8xf32>
    %144 = arith.truncf %143 : vector<8x8xf32> to vector<8x8xbf16>
    %cst_44 = arith.constant dense<0.000000e+00> : vector<8x8xf32>
    %145 = tpu.matmul %144, %91, %cst_44 {dimension_numbers = #tpu.dot_dimension_numbers<[1], [0], [0], [1], [0, 0, 1, 1], [], []>} : vector<8x8xbf16>, vector<8x8xbf16>, vector<8x8xf32> -> vector<8x8xf32>
    %146 = vector.extract_strided_slice %14 {offsets = [0, 16], sizes = [8, 8], strides = [1, 1]} : vector<8x32xbf16> to vector<8x8xbf16>
    %c0_45 = arith.constant 0 : index
    %c16 = arith.constant 16 : index
    %147 = vector.load %arg15[%c0_45, %c16] : memref<8x32xbf16, #tpu.memory_space<vmem>>, vector<8x8xbf16>
    %c0_46 = arith.constant 0 : index
    %c16_47 = arith.constant 16 : index
    %148 = vector.load %arg16[%c0_46, %c16_47] : memref<8x32xbf16, #tpu.memory_space<vmem>>, vector<8x8xbf16>
    %cst_48 = arith.constant dense<0.000000e+00> : vector<8x8xf32>
    %149 = tpu.matmul %146, %147, %cst_48 {dimension_numbers = #tpu.dot_dimension_numbers<[1], [1], [0], [0], [0, 0, 1, 0], [], []>} : vector<8x8xbf16>, vector<8x8xbf16>, vector<8x8xf32> -> vector<8x8xf32>
    %150 = arith.addf %149, %28 : vector<8x8xf32>
    %cst_49 = arith.constant dense<0xFF800000> : vector<8xf32>
    %151 = vector.multi_reduction <maximumf>, %150, %cst_49 [1] : vector<8x8xf32> to vector<8xf32>
    %152 = vector.shape_cast %151 : vector<8xf32> to vector<8x1xf32>
    %153 = vector.broadcast %152 : vector<8x1xf32> to vector<8x8xf32>
    %154 = arith.subf %150, %153 : vector<8x8xf32>
    %155 = math.exp %154 : vector<8x8xf32>
    %cst_50 = arith.constant dense<0.000000e+00> : vector<8xf32>
    %156 = vector.multi_reduction <add>, %155, %cst_50 [1] : vector<8x8xf32> to vector<8xf32>
    %157 = vector.shape_cast %156 : vector<8xf32> to vector<8x1xf32>
    %158 = tpu.reciprocal %157 {approx = true} : vector<8x1xf32> -> vector<8x1xf32>
    %159 = vector.broadcast %158 : vector<8x1xf32> to vector<8x8xf32>
    %160 = arith.mulf %155, %159 : vector<8x8xf32>
    %cst_51 = arith.constant dense<0.000000e+00> : vector<8xf32>
    %161 = vector.multi_reduction <add>, %160, %cst_51 [1] : vector<8x8xf32> to vector<8xf32>
    %162 = vector.shape_cast %161 : vector<8xf32> to vector<8x1xf32>
    %cst_52 = arith.constant 0.000000e+00 : f32
    %163 = vector.broadcast %cst_52 : f32 to vector<8x1xf32>
    %164 = vector.extract_strided_slice %160 {offsets = [0, 0], sizes = [8, 7], strides = [1, 1]} : vector<8x8xf32> to vector<8x7xf32>
    %165 = tpu.concatenate %163, %164 in 1 : vector<8x1xf32>, vector<8x7xf32> -> vector<8x8xf32>
    %166 = arith.addf %160, %165 : vector<8x8xf32>
    %cst_53 = arith.constant 0.000000e+00 : f32
    %167 = vector.broadcast %cst_53 : f32 to vector<8x2xf32>
    %168 = vector.extract_strided_slice %166 {offsets = [0, 0], sizes = [8, 6], strides = [1, 1]} : vector<8x8xf32> to vector<8x6xf32>
    %169 = tpu.concatenate %167, %168 in 1 : vector<8x2xf32>, vector<8x6xf32> -> vector<8x8xf32>
    %170 = arith.addf %166, %169 : vector<8x8xf32>
    %cst_54 = arith.constant 0.000000e+00 : f32
    %171 = vector.broadcast %cst_54 : f32 to vector<8x4xf32>
    %172 = vector.extract_strided_slice %170 {offsets = [0, 0], sizes = [8, 4], strides = [1, 1]} : vector<8x8xf32> to vector<8x4xf32>
    %173 = tpu.concatenate %171, %172 in 1 : vector<8x4xf32>, vector<8x4xf32> -> vector<8x8xf32>
    %174 = arith.addf %170, %173 : vector<8x8xf32>
    %175 = vector.broadcast %162 : vector<8x1xf32> to vector<8x8xf32>
    %176 = arith.subf %175, %174 : vector<8x8xf32>
    %177 = arith.mulf %176, %31 : vector<8x8xf32>
    %cst_55 = arith.constant 0.000000e+00 : f32
    %178 = vector.broadcast %cst_55 : f32 to vector<8x8xf32>
    %179 = arith.maximumf %177, %178 : vector<8x8xf32>
    %180 = math.sqrt %179 : vector<8x8xf32>
    %c2 = arith.constant 2 : index
    %181 = memref.load %arg2[%c2] : memref<4xf32, #tpu.memory_space<smem>>
    %182 = vector.broadcast %181 : f32 to vector<8x8xf32>
    %183 = arith.mulf %180, %182 : vector<8x8xf32>
    %cst_56 = arith.constant -11.5129251 : f32
    %184 = vector.broadcast %cst_56 : f32 to vector<8x8xf32>
    %185 = arith.maximumf %183, %184 : vector<8x8xf32>
    %186 = math.exp %185 : vector<8x8xf32>
    %187 = arith.mulf %149, %186 : vector<8x8xf32>
    %188 = arith.addf %187, %28 : vector<8x8xf32>
    %cst_57 = arith.constant dense<0xFF800000> : vector<8xf32>
    %189 = vector.multi_reduction <maximumf>, %188, %cst_57 [1] : vector<8x8xf32> to vector<8xf32>
    %190 = vector.shape_cast %189 : vector<8xf32> to vector<8x1xf32>
    %191 = vector.broadcast %190 : vector<8x1xf32> to vector<8x8xf32>
    %192 = arith.subf %188, %191 : vector<8x8xf32>
    %193 = math.exp %192 : vector<8x8xf32>
    %cst_58 = arith.constant dense<0.000000e+00> : vector<8xf32>
    %194 = vector.multi_reduction <add>, %193, %cst_58 [1] : vector<8x8xf32> to vector<8xf32>
    %195 = vector.shape_cast %194 : vector<8xf32> to vector<8x1xf32>
    %196 = tpu.reciprocal %195 {approx = true} : vector<8x1xf32> -> vector<8x1xf32>
    %197 = vector.broadcast %196 : vector<8x1xf32> to vector<8x8xf32>
    %198 = arith.mulf %193, %197 : vector<8x8xf32>
    %cst_59 = arith.constant 0.000000e+00 : f32
    %199 = vector.broadcast %cst_59 : f32 to vector<8x8xf32>
    %200 = arith.select %25, %198, %199 : vector<8x8xi1>, vector<8x8xf32>
    %201 = arith.truncf %200 : vector<8x8xf32> to vector<8x8xbf16>
    %cst_60 = arith.constant dense<0.000000e+00> : vector<8x8xf32>
    %202 = tpu.matmul %201, %148, %cst_60 {dimension_numbers = #tpu.dot_dimension_numbers<[1], [0], [0], [1], [0, 0, 1, 1], [], []>} : vector<8x8xbf16>, vector<8x8xbf16>, vector<8x8xf32> -> vector<8x8xf32>
    %203 = vector.extract_strided_slice %14 {offsets = [0, 24], sizes = [8, 8], strides = [1, 1]} : vector<8x32xbf16> to vector<8x8xbf16>
    %c0_61 = arith.constant 0 : index
    %c24 = arith.constant 24 : index
    %204 = vector.load %arg15[%c0_61, %c24] : memref<8x32xbf16, #tpu.memory_space<vmem>>, vector<8x8xbf16>
    %c0_62 = arith.constant 0 : index
    %c24_63 = arith.constant 24 : index
    %205 = vector.load %arg16[%c0_62, %c24_63] : memref<8x32xbf16, #tpu.memory_space<vmem>>, vector<8x8xbf16>
    %cst_64 = arith.constant dense<0.000000e+00> : vector<8x8xf32>
    %206 = tpu.matmul %203, %204, %cst_64 {dimension_numbers = #tpu.dot_dimension_numbers<[1], [1], [0], [0], [0, 0, 1, 0], [], []>} : vector<8x8xbf16>, vector<8x8xbf16>, vector<8x8xf32> -> vector<8x8xf32>
    %207 = arith.addf %206, %28 : vector<8x8xf32>
    %cst_65 = arith.constant dense<0xFF800000> : vector<8xf32>
    %208 = vector.multi_reduction <maximumf>, %207, %cst_65 [1] : vector<8x8xf32> to vector<8xf32>
    %209 = vector.shape_cast %208 : vector<8xf32> to vector<8x1xf32>
    %210 = vector.broadcast %209 : vector<8x1xf32> to vector<8x8xf32>
    %211 = arith.subf %207, %210 : vector<8x8xf32>
    %212 = math.exp %211 : vector<8x8xf32>
    %cst_66 = arith.constant dense<0.000000e+00> : vector<8xf32>
    %213 = vector.multi_reduction <add>, %212, %cst_66 [1] : vector<8x8xf32> to vector<8xf32>
    %214 = vector.shape_cast %213 : vector<8xf32> to vector<8x1xf32>
    %215 = tpu.reciprocal %214 {approx = true} : vector<8x1xf32> -> vector<8x1xf32>
    %216 = vector.broadcast %215 : vector<8x1xf32> to vector<8x8xf32>
    %217 = arith.mulf %212, %216 : vector<8x8xf32>
    %cst_67 = arith.constant dense<0.000000e+00> : vector<8xf32>
    %218 = vector.multi_reduction <add>, %217, %cst_67 [1] : vector<8x8xf32> to vector<8xf32>
    %219 = vector.shape_cast %218 : vector<8xf32> to vector<8x1xf32>
    %cst_68 = arith.constant 0.000000e+00 : f32
    %220 = vector.broadcast %cst_68 : f32 to vector<8x1xf32>
    %221 = vector.extract_strided_slice %217 {offsets = [0, 0], sizes = [8, 7], strides = [1, 1]} : vector<8x8xf32> to vector<8x7xf32>
    %222 = tpu.concatenate %220, %221 in 1 : vector<8x1xf32>, vector<8x7xf32> -> vector<8x8xf32>
    %223 = arith.addf %217, %222 : vector<8x8xf32>
    %cst_69 = arith.constant 0.000000e+00 : f32
    %224 = vector.broadcast %cst_69 : f32 to vector<8x2xf32>
    %225 = vector.extract_strided_slice %223 {offsets = [0, 0], sizes = [8, 6], strides = [1, 1]} : vector<8x8xf32> to vector<8x6xf32>
    %226 = tpu.concatenate %224, %225 in 1 : vector<8x2xf32>, vector<8x6xf32> -> vector<8x8xf32>
    %227 = arith.addf %223, %226 : vector<8x8xf32>
    %cst_70 = arith.constant 0.000000e+00 : f32
    %228 = vector.broadcast %cst_70 : f32 to vector<8x4xf32>
    %229 = vector.extract_strided_slice %227 {offsets = [0, 0], sizes = [8, 4], strides = [1, 1]} : vector<8x8xf32> to vector<8x4xf32>
    %230 = tpu.concatenate %228, %229 in 1 : vector<8x4xf32>, vector<8x4xf32> -> vector<8x8xf32>
    %231 = arith.addf %227, %230 : vector<8x8xf32>
    %232 = vector.broadcast %219 : vector<8x1xf32> to vector<8x8xf32>
    %233 = arith.subf %232, %231 : vector<8x8xf32>
    %234 = arith.mulf %233, %31 : vector<8x8xf32>
    %cst_71 = arith.constant 0.000000e+00 : f32
    %235 = vector.broadcast %cst_71 : f32 to vector<8x8xf32>
    %236 = arith.maximumf %234, %235 : vector<8x8xf32>
    %237 = math.sqrt %236 : vector<8x8xf32>
    %c3 = arith.constant 3 : index
    %238 = memref.load %arg2[%c3] : memref<4xf32, #tpu.memory_space<smem>>
    %239 = vector.broadcast %238 : f32 to vector<8x8xf32>
    %240 = arith.mulf %237, %239 : vector<8x8xf32>
    %cst_72 = arith.constant -11.5129251 : f32
    %241 = vector.broadcast %cst_72 : f32 to vector<8x8xf32>
    %242 = arith.maximumf %240, %241 : vector<8x8xf32>
    %243 = math.exp %242 : vector<8x8xf32>
    %244 = arith.mulf %206, %243 : vector<8x8xf32>
    %245 = arith.addf %244, %28 : vector<8x8xf32>
    %cst_73 = arith.constant dense<0xFF800000> : vector<8xf32>
    %246 = vector.multi_reduction <maximumf>, %245, %cst_73 [1] : vector<8x8xf32> to vector<8xf32>
    %247 = vector.shape_cast %246 : vector<8xf32> to vector<8x1xf32>
    %248 = vector.broadcast %247 : vector<8x1xf32> to vector<8x8xf32>
    %249 = arith.subf %245, %248 : vector<8x8xf32>
    %250 = math.exp %249 : vector<8x8xf32>
    %cst_74 = arith.constant dense<0.000000e+00> : vector<8xf32>
    %251 = vector.multi_reduction <add>, %250, %cst_74 [1] : vector<8x8xf32> to vector<8xf32>
    %252 = vector.shape_cast %251 : vector<8xf32> to vector<8x1xf32>
    %253 = tpu.reciprocal %252 {approx = true} : vector<8x1xf32> -> vector<8x1xf32>
    %254 = vector.broadcast %253 : vector<8x1xf32> to vector<8x8xf32>
    %255 = arith.mulf %250, %254 : vector<8x8xf32>
    %cst_75 = arith.constant 0.000000e+00 : f32
    %256 = vector.broadcast %cst_75 : f32 to vector<8x8xf32>
    %257 = arith.select %25, %255, %256 : vector<8x8xi1>, vector<8x8xf32>
    %258 = arith.truncf %257 : vector<8x8xf32> to vector<8x8xbf16>
    %cst_76 = arith.constant dense<0.000000e+00> : vector<8x8xf32>
    %259 = tpu.matmul %258, %205, %cst_76 {dimension_numbers = #tpu.dot_dimension_numbers<[1], [0], [0], [1], [0, 0, 1, 1], [], []>} : vector<8x8xbf16>, vector<8x8xbf16>, vector<8x8xf32> -> vector<8x8xf32>
    %260 = tpu.concatenate %88, %145, %202, %259 in 1 : vector<8x8xf32>, vector<8x8xf32>, vector<8x8xf32>, vector<8x8xf32> -> vector<8x32xf32>
    %261 = arith.truncf %260 : vector<8x32xf32> to vector<8x32xbf16>
    %c0_77 = arith.constant 0 : index
    %c0_78 = arith.constant 0 : index
    %262 = vector.load %arg10[%c0_77, %c0_78] : memref<32x32xbf16, #tpu.memory_space<vmem>>, vector<32x32xbf16>
    %cst_79 = arith.constant dense<0.000000e+00> : vector<8x32xf32>
    %263 = tpu.matmul %261, %262, %cst_79 {dimension_numbers = #tpu.dot_dimension_numbers<[1], [0], [0], [1], [0, 0, 1, 1], [], []>} : vector<8x32xbf16>, vector<32x32xbf16>, vector<8x32xf32> -> vector<8x32xf32>
    %c0_80 = arith.constant 0 : index
    %c0_81 = arith.constant 0 : index
    %264 = vector.load %arg11[%c0_80, %c0_81] : memref<1x32xf32, #tpu.memory_space<vmem>>, vector<1x32xf32>
    %265 = vector.broadcast %264 : vector<1x32xf32> to vector<8x32xf32>
    %266 = arith.addf %263, %265 : vector<8x32xf32>
    %267 = arith.addf %5, %266 : vector<8x32xf32>
    %cst_82 = arith.constant dense<0.000000e+00> : vector<8xf32>
    %268 = vector.multi_reduction <add>, %267, %cst_82 [1] : vector<8x32xf32> to vector<8xf32>
    %269 = vector.shape_cast %268 : vector<8xf32> to vector<8x1xf32>
    %cst_83 = arith.constant 3.200000e+01 : f32
    %270 = vector.broadcast %cst_83 : f32 to vector<8x1xf32>
    %271 = arith.divf %269, %270 : vector<8x1xf32>
    %272 = vector.broadcast %271 : vector<8x1xf32> to vector<8x32xf32>
    %273 = arith.subf %267, %272 : vector<8x32xf32>
    %274 = arith.mulf %273, %273 : vector<8x32xf32>
    %cst_84 = arith.constant dense<0.000000e+00> : vector<8xf32>
    %275 = vector.multi_reduction <add>, %274, %cst_84 [1] : vector<8x32xf32> to vector<8xf32>
    %276 = vector.shape_cast %275 : vector<8xf32> to vector<8x1xf32>
    %cst_85 = arith.constant 3.200000e+01 : f32
    %277 = vector.broadcast %cst_85 : f32 to vector<8x1xf32>
    %278 = arith.divf %276, %277 : vector<8x1xf32>
    %279 = vector.broadcast %271 : vector<8x1xf32> to vector<8x32xf32>
    %280 = arith.subf %267, %279 : vector<8x32xf32>
    %cst_86 = arith.constant 9.99999974E-6 : f32
    %281 = vector.broadcast %cst_86 : f32 to vector<8x1xf32>
    %282 = arith.addf %278, %281 : vector<8x1xf32>
    %283 = math.rsqrt %282 : vector<8x1xf32>
    %284 = vector.broadcast %283 : vector<8x1xf32> to vector<8x32xf32>
    %285 = arith.mulf %280, %284 : vector<8x32xf32>
    %c0_87 = arith.constant 0 : index
    %c0_88 = arith.constant 0 : index
    %286 = vector.load %arg12[%c0_87, %c0_88] : memref<1x32xf32, #tpu.memory_space<vmem>>, vector<1x32xf32>
    %287 = vector.broadcast %286 : vector<1x32xf32> to vector<8x32xf32>
    %288 = arith.mulf %285, %287 : vector<8x32xf32>
    %c0_89 = arith.constant 0 : index
    %c0_90 = arith.constant 0 : index
    %289 = vector.load %arg13[%c0_89, %c0_90] : memref<1x32xf32, #tpu.memory_space<vmem>>, vector<1x32xf32>
    %290 = vector.broadcast %289 : vector<1x32xf32> to vector<8x32xf32>
    %291 = arith.addf %288, %290 : vector<8x32xf32>
    %c0_91 = arith.constant 0 : index
    %c0_92 = arith.constant 0 : index
    %c0_93 = arith.constant 0 : index
    %292 = vector.load %arg14[%c0_91, %c0_92, %c0_93] : memref<1x8x32xf32, #tpu.memory_space<vmem>>, vector<1x8x32xf32>
    %293 = vector.shape_cast %292 : vector<1x8x32xf32> to vector<8x32xf32>
    %294 = vector.shape_cast %291 : vector<8x32xf32> to vector<1x8x32xf32>
    tpu.vector_store %arg14[%c0_91, %c0_92, %c0_93], %294 {strides = array<i32>} : memref<1x8x32xf32, #tpu.memory_space<vmem>>, vector<1x8x32xf32>,
    return
  }
  func.func @transform_0(%arg0: i32, %arg1: i32) -> i32 {
    %c0_i32 = arith.constant 0 : i32
    %c0_i32_0 = arith.constant 0 : i32
    return %c0_i32 : i32
  }
  func.func @transform_1(%arg0: i32, %arg1: i32) -> (i32, i32, i32) {
    %c0_i32 = arith.constant 0 : i32
    %c0_i32_0 = arith.constant 0 : i32
    return %arg0, %arg1, %c0_i32 : i32, i32, i32
  }
  func.func @transform_2(%arg0: i32, %arg1: i32) -> (i32, i32, i32) {
    %c0_i32 = arith.constant 0 : i32
    %c0_i32_0 = arith.constant 0 : i32
    %c0_i32_1 = arith.constant 0 : i32
    return %arg0, %c0_i32, %c0_i32_0 : i32, i32, i32
  }
  func.func @transform_3(%arg0: i32, %arg1: i32) -> (i32, i32, i32) {
    %c0_i32 = arith.constant 0 : i32
    %c0_i32_0 = arith.constant 0 : i32
    %c0_i32_1 = arith.constant 0 : i32
    return %arg0, %c0_i32, %c0_i32_0 : i32, i32, i32
  }
  func.func @transform_4(%arg0: i32, %arg1: i32) -> (i32, i32) {
    %c0_i32 = arith.constant 0 : i32
    %c0_i32_0 = arith.constant 0 : i32
    %c0_i32_1 = arith.constant 0 : i32
    return %c0_i32, %c0_i32_0 : i32, i32
  }
  func.func @transform_5(%arg0: i32, %arg1: i32) -> (i32, i32) {
    %c0_i32 = arith.constant 0 : i32
    %c0_i32_0 = arith.constant 0 : i32
    %c0_i32_1 = arith.constant 0 : i32
    return %c0_i32, %c0_i32_0 : i32, i32
  }
  func.func @transform_6(%arg0: i32, %arg1: i32) -> (i32, i32) {
    %c0_i32 = arith.constant 0 : i32
    %c0_i32_0 = arith.constant 0 : i32
    %c0_i32_1 = arith.constant 0 : i32
    return %c0_i32, %c0_i32_0 : i32, i32
  }
  func.func @transform_7(%arg0: i32, %arg1: i32) -> (i32, i32) {
    %c0_i32 = arith.constant 0 : i32
    %c0_i32_0 = arith.constant 0 : i32
    %c0_i32_1 = arith.constant 0 : i32
    return %c0_i32, %c0_i32_0 : i32, i32
  }
  func.func @transform_8(%arg0: i32, %arg1: i32) -> (i32, i32) {
    %c0_i32 = arith.constant 0 : i32
    %c0_i32_0 = arith.constant 0 : i32
    %c0_i32_1 = arith.constant 0 : i32
    return %c0_i32, %c0_i32_0 : i32, i32
  }
  func.func @transform_9(%arg0: i32, %arg1: i32) -> (i32, i32) {
    %c0_i32 = arith.constant 0 : i32
    %c0_i32_0 = arith.constant 0 : i32
    %c0_i32_1 = arith.constant 0 : i32
    return %c0_i32, %c0_i32_0 : i32, i32
  }
  func.func @transform_10(%arg0: i32, %arg1: i32) -> (i32, i32) {
    %c0_i32 = arith.constant 0 : i32
    %c0_i32_0 = arith.constant 0 : i32
    %c0_i32_1 = arith.constant 0 : i32
    return %c0_i32, %c0_i32_0 : i32, i32
  }
  func.func @transform_11(%arg0: i32, %arg1: i32) -> (i32, i32) {
    %c0_i32 = arith.constant 0 : i32
    %c0_i32_0 = arith.constant 0 : i32
    %c0_i32_1 = arith.constant 0 : i32
    return %c0_i32, %c0_i32_0 : i32, i32
  }
  func.func @transform_12(%arg0: i32, %arg1: i32) -> (i32, i32, i32) {
    %c0_i32 = arith.constant 0 : i32
    %c0_i32_0 = arith.constant 0 : i32
    return %arg0, %arg1, %c0_i32 : i32, i32, i32
  }
}

</mosaic_0001>

<llo_original>
// kernel: tpu_custom_call.1
$region0: #{tpu_custom_call.1}
  #allocation0 [shape = 'u32[]', space=smem, size = 0x4, offset = 0x4, fixed_abs, tag = 'smem constant byte address 0x4 - core index']
  #allocation1 [shape = 'u32[144,128]{1,0:T(1,128)}', space=vmem, size = 0x12000, scoped, tag = 'internal scratch']
  #allocation2 [shape = 'bf16[8,32]{1,0:T(8,128)(2,1)}', space=vmem, size = 0x800, scoped, tag = 'scratch operand']
  #allocation3 [shape = 'bf16[8,32]{1,0:T(8,128)(2,1)}', space=vmem, size = 0x800, scoped, tag = 'scratch operand']
  %s0 = inlined_call_operand.hbm [shape: f32[4], index: 0, kind: input, shape index: {}]
  %s1 = inlined_call_operand.hbm [shape: f32[2,8,32], index: 1, kind: input, shape index: {}]
  %s2 = inlined_call_operand.hbm [shape: f32[2,8,32], index: 2, kind: input, shape index: {}]
  %s3 = inlined_call_operand.hbm [shape: f32[2,8,32], index: 3, kind: input, shape index: {}]
  %s4 = inlined_call_operand.hbm [shape: bf16[32,32], index: 4, kind: input, shape index: {}]
  %s5 = inlined_call_operand.vmem [shape: f32[1,32], index: 5, kind: input, shape index: {}]
  %s6 = inlined_call_operand.vmem [shape: bf16[32,32], index: 6, kind: input, shape index: {}]
  %s7 = inlined_call_operand.vmem [shape: f32[1,32], index: 7, kind: input, shape index: {}]
  %s8 = inlined_call_operand.hbm [shape: bf16[32,32], index: 8, kind: input, shape index: {}]
  %s9 = inlined_call_operand.vmem [shape: f32[1,32], index: 9, kind: input, shape index: {}]
  %s10 = inlined_call_operand.vmem [shape: f32[1,32], index: 10, kind: input, shape index: {}]
  %s11 = inlined_call_operand.vmem [shape: f32[1,32], index: 11, kind: input, shape index: {}]
  %s12 = inlined_call_operand.hbm [shape: f32[2,8,32], index: 12, kind: output, shape index: {}]
  %s13 = sld [smem:[#allocation0]]
  $region109: #{tpu_custom_call.1} parent=0
    _
  %s15 = ssub.s32 1, %s13
  %s16 = scalar_select 0, %s15, %s13
  $region1: #{tpu_custom_call.1} parent=0
    #allocation4 [shape = 'u8[512]{0}', space=smem, size = 0x200, scoped, tag = 'input window, operand 0, single buffered']
    #allocation5 [shape = 's32[2]{0}', space=sflag, size = 0x8, scoped, tag = 'scoped memory for tpu_custom_call.1']
    #allocation6 [shape = 's32[2]{0}', space=sflag, size = 0x8, scoped, tag = 'scoped memory for tpu_custom_call.1']
    #allocation7 [shape = 's32[2]{0}', space=sflag, size = 0x8, scoped, tag = 'scoped memory for tpu_custom_call.1']
    #allocation8 [shape = 'u8[8192]{0}', space=vmem, size = 0x2000, scoped, tag = 'input window, operand 1']
    #allocation9 [shape = 'u8[8192]{0}', space=vmem, size = 0x2000, scoped, tag = 'input window, operand 2']
    #allocation10 [shape = 's32[2]{0}', space=sflag, size = 0x8, scoped, tag = 'scoped memory for tpu_custom_call.1']
    #allocation11 [shape = 'u8[8192]{0}', space=vmem, size = 0x2000, scoped, tag = 'input window, operand 3']
    #allocation12 [shape = 'u8[8192]{0}', space=vmem, size = 0x2000, scoped, tag = 'input window, operand 4, single buffered']
    #allocation13 [shape = 's32[1]{0}', space=sflag, size = 0x4, scoped, tag = 'scoped memory for tpu_custom_call.1']
    #allocation14 [shape = 'u8[8192]{0}', space=vmem, size = 0x2000, scoped, tag = 'input window, operand 8, single buffered']
    #allocation15 [shape = 'u8[8192]{0}', space=vmem, size = 0x2000, scoped, tag = 'output window, operand 0']
    %17 = vsyncpa [#allocation7], 0
    %18 = vsyncpa [#allocation5], 0
    %s19 = scalar_lea.sflag [#allocation5], 1
    %20 = vsyncpa %s19, 0
    %21 = vsyncpa [#allocation10], 0
    %s22 = scalar_lea.sflag [#allocation10], 1
    %23 = vsyncpa %s22, 0
    %24 = vsyncpa [#allocation13], 0
    %25 = vsyncpa [#allocation6], 0
    %s26 = scalar_lea.sflag [#allocation6], 1
    %27 = vsyncpa %s26, 0
    loop: start=0, step=1, limit=4
    $region2: #{tpu_custom_call.1} parent=1 // loop_pre_header
      _
    $region3: #{tpu_custom_call.1} parent=1 // loop_header
      %s29 = sphi 0, %s33
      %p30 = scmp.ge.s32.totalorder %s29, 4
      %s36 = sphi 0, %s48
      %s37 = sphi 0, %s44
      %s38 = sphi 0, %s36
      %s39 = sphi 0, %s37
      %s40 = sphi 0, %s38
      %s41 = sphi 0, %s39
      %s49 = sphi 0, %s49
      %s51 = sphi 0, %s49
      %s52 = sphi 0, %s51
      %s66 = sphi 0, %s52
      %s74 = sphi 0, %s76
      %s77 = sphi 0, %s74
      %s78 = sphi 0, %s77
      %s94 = sphi 0, %s78
      %s100 = sphi 0, %s102
      %s103 = sphi 0, %s100
      %s104 = sphi 0, %s103
      %s120 = sphi 0, %s104
      %s126 = sphi 0, %s128
      %s129 = sphi 0, %s126
      %s130 = sphi 0, %s129
      %s146 = sphi 0, %s130
      %s150 = sphi 0, %s150
      %s152 = sphi 0, %s150
      %s153 = sphi 0, %s152
      %s167 = sphi 0, %s153
      %s171 = sphi 0, %s171
      %s173 = sphi 0, %s171
      %s174 = sphi 0, %s173
      %s188 = sphi 0, %s174
      %s192 = sphi 0, %s192
      %s194 = sphi 0, %s192
      %s195 = sphi 0, %s194
      %s209 = sphi 0, %s195
      %s213 = sphi 0, %s213
      %s215 = sphi 0, %s213
      %s216 = sphi 0, %s215
      %s230 = sphi 0, %s216
      %s234 = sphi 0, %s234
      %s236 = sphi 0, %s234
      %s237 = sphi 0, %s236
      %s251 = sphi 0, %s237
      %s255 = sphi 0, %s255
      %s257 = sphi 0, %s255
      %s258 = sphi 0, %s257
      %s272 = sphi 0, %s258
      %s276 = sphi 0, %s276
      %s278 = sphi 0, %s276
      %s279 = sphi 0, %s278
      %s293 = sphi 0, %s279
      %s297 = sphi 0, %s297
      %s299 = sphi 0, %s297
      %s300 = sphi 0, %s299
      %s314 = sphi 0, %s300
      %s322 = sphi 0, %s324
      %s325 = sphi 0, %s322
      %s326 = sphi 0, %s325
      %s342 = sphi 0, %s326
    $region4: #{tpu_custom_call.1} parent=1 // loop_header_branch
      %32 = sbr.rel (%p30) target = $region8
    $region5: #{tpu_custom_call.1} parent=1 // loop_body
      %s34 = ssub.s32 %s29, 1
      %s35 = ssub.s32 %s29, 2
      %s42 = sadd.s32 1, %s37
      %p43 = scmp.ge.s32.totalorder %s42, 1
      %s44 = scalar_select %p43, 0, %s42
      %s45 = sadd.s32 1, %s36
      %s46 = scalar_select %p43, %s45, %s36
      %p47 = scmp.ge.s32.totalorder %s46, 2
      %s48 = scalar_select %p47, 0, %s46
      %s50 = sadd.s32 %s49, 1
      %p53 = scmp.eq.s32.totalorder %s29, 1
      %p54 = scmp.ne.s32.totalorder %s49, %s51
      %p55 = scmp.eq.s32.totalorder %s29, 0
      %p56 = por %p54, %p55
      %p57 = scmp.ne.s32.totalorder %s49, %s51
      %p58 = scmp.eq.s32.totalorder %s34, 1
      %p59 = por %p57, %p58
      %p60 = scmp.ne.s32.totalorder %s51, %s52
      %p61 = scmp.eq.s32.totalorder %s34, 0
      %p62 = por %p60, %p61
      %p63 = scmp.ne.s32.totalorder %s51, %s52
      %p64 = scmp.eq.s32.totalorder %s35, 1
      %p65 = por %p63, %p64
      %p67 = scmp.ne.s32.totalorder %s52, %s66
      %p68 = scmp.eq.s32.totalorder %s35, 0
      %p69 = por %p67, %p68
      %s70 = ssub.s32 %s36, %s48
      %s71 = ssub.s32 %s37, %s44
      %s72 = sor.u32 %s70, %s71
      %p73 = scmp.eq.s32.totalorder %s72, 0
      %s75 = sadd.s32 %s74, 1
      %s76 = scalar_select %p73, %s74, %s75
      %p79 = pneg %p73
      %p80 = scmp.eq.s32.totalorder %s29, 1
      %p81 = por %p79, %p80
      %p82 = scmp.ne.s32.totalorder %s74, %s77
      %p83 = scmp.eq.s32.totalorder %s29, 0
      %p84 = por %p82, %p83
      %p85 = scmp.ne.s32.totalorder %s74, %s77
      %p86 = scmp.eq.s32.totalorder %s34, 1
      %p87 = por %p85, %p86
      %p88 = scmp.ne.s32.totalorder %s77, %s78
      %p89 = scmp.eq.s32.totalorder %s34, 0
      %p90 = por %p88, %p89
      %p91 = scmp.ne.s32.totalorder %s77, %s78
      %p92 = scmp.eq.s32.totalorder %s35, 1
      %p93 = por %p91, %p92
      %p95 = scmp.ne.s32.totalorder %s78, %s94
      %p96 = scmp.eq.s32.totalorder %s35, 0
      %p97 = por %p95, %p96
      %s98 = ssub.s32 %s36, %s48
      %p99 = scmp.eq.s32.totalorder %s98, 0
      %s101 = sadd.s32 %s100, 1
      %s102 = scalar_select %p99, %s100, %s101
      %p105 = pneg %p99
      %p106 = scmp.eq.s32.totalorder %s29, 1
      %p107 = por %p105, %p106
      %p108 = scmp.ne.s32.totalorder %s100, %s103
      %p109 = scmp.eq.s32.totalorder %s29, 0
      %p110 = por %p108, %p109
      %p111 = scmp.ne.s32.totalorder %s100, %s103
      %p112 = scmp.eq.s32.totalorder %s34, 1
      %p113 = por %p111, %p112
      %p114 = scmp.ne.s32.totalorder %s103, %s104
      %p115 = scmp.eq.s32.totalorder %s34, 0
      %p116 = por %p114, %p115
      %p117 = scmp.ne.s32.totalorder %s103, %s104
      %p118 = scmp.eq.s32.totalorder %s35, 1
      %p119 = por %p117, %p118
      %p121 = scmp.ne.s32.totalorder %s104, %s120
      %p122 = scmp.eq.s32.totalorder %s35, 0
      %p123 = por %p121, %p122
      %s124 = ssub.s32 %s36, %s48
      %p125 = scmp.eq.s32.totalorder %s124, 0
      %s127 = sadd.s32 %s126, 1
      %s128 = scalar_select %p125, %s126, %s127
      %p131 = pneg %p125
      %p132 = scmp.eq.s32.totalorder %s29, 1
      %p133 = por %p131, %p132
      %p134 = scmp.ne.s32.totalorder %s126, %s129
      %p135 = scmp.eq.s32.totalorder %s29, 0
      %p136 = por %p134, %p135
      %p137 = scmp.ne.s32.totalorder %s126, %s129
      %p138 = scmp.eq.s32.totalorder %s34, 1
      %p139 = por %p137, %p138
      %p140 = scmp.ne.s32.totalorder %s129, %s130
      %p141 = scmp.eq.s32.totalorder %s34, 0
      %p142 = por %p140, %p141
      %p143 = scmp.ne.s32.totalorder %s129, %s130
      %p144 = scmp.eq.s32.totalorder %s35, 1
      %p145 = por %p143, %p144
      %p147 = scmp.ne.s32.totalorder %s130, %s146
      %p148 = scmp.eq.s32.totalorder %s35, 0
      %p149 = por %p147, %p148
      %s151 = sadd.s32 %s150, 1
      %p154 = scmp.eq.s32.totalorder %s29, 1
      %p155 = scmp.ne.s32.totalorder %s150, %s152
      %p156 = scmp.eq.s32.totalorder %s29, 0
      %p157 = por %p155, %p156
      %p158 = scmp.ne.s32.totalorder %s150, %s152
      %p159 = scmp.eq.s32.totalorder %s34, 1
      %p160 = por %p158, %p159
      %p161 = scmp.ne.s32.totalorder %s152, %s153
      %p162 = scmp.eq.s32.totalorder %s34, 0
      %p163 = por %p161, %p162
      %p164 = scmp.ne.s32.totalorder %s152, %s153
      %p165 = scmp.eq.s32.totalorder %s35, 1
      %p166 = por %p164, %p165
      %p168 = scmp.ne.s32.totalorder %s153, %s167
      %p169 = scmp.eq.s32.totalorder %s35, 0
      %p170 = por %p168, %p169
      %s172 = sadd.s32 %s171, 1
      %p175 = scmp.eq.s32.totalorder %s29, 1
      %p176 = scmp.ne.s32.totalorder %s171, %s173
      %p177 = scmp.eq.s32.totalorder %s29, 0
      %p178 = por %p176, %p177
      %p179 = scmp.ne.s32.totalorder %s171, %s173
      %p180 = scmp.eq.s32.totalorder %s34, 1
      %p181 = por %p179, %p180
      %p182 = scmp.ne.s32.totalorder %s173, %s174
      %p183 = scmp.eq.s32.totalorder %s34, 0
      %p184 = por %p182, %p183
      %p185 = scmp.ne.s32.totalorder %s173, %s174
      %p186 = scmp.eq.s32.totalorder %s35, 1
      %p187 = por %p185, %p186
      %p189 = scmp.ne.s32.totalorder %s174, %s188
      %p190 = scmp.eq.s32.totalorder %s35, 0
      %p191 = por %p189, %p190
      %s193 = sadd.s32 %s192, 1
      %p196 = scmp.eq.s32.totalorder %s29, 1
      %p197 = scmp.ne.s32.totalorder %s192, %s194
      %p198 = scmp.eq.s32.totalorder %s29, 0
      %p199 = por %p197, %p198
      %p200 = scmp.ne.s32.totalorder %s192, %s194
      %p201 = scmp.eq.s32.totalorder %s34, 1
      %p202 = por %p200, %p201
      %p203 = scmp.ne.s32.totalorder %s194, %s195
      %p204 = scmp.eq.s32.totalorder %s34, 0
      %p205 = por %p203, %p204
      %p206 = scmp.ne.s32.totalorder %s194, %s195
      %p207 = scmp.eq.s32.totalorder %s35, 1
      %p208 = por %p206, %p207
      %p210 = scmp.ne.s32.totalorder %s195, %s209
      %p211 = scmp.eq.s32.totalorder %s35, 0
      %p212 = por %p210, %p211
      %s214 = sadd.s32 %s213, 1
      %p217 = scmp.eq.s32.totalorder %s29, 1
      %p218 = scmp.ne.s32.totalorder %s213, %s215
      %p219 = scmp.eq.s32.totalorder %s29, 0
      %p220 = por %p218, %p219
      %p221 = scmp.ne.s32.totalorder %s213, %s215
      %p222 = scmp.eq.s32.totalorder %s34, 1
      %p223 = por %p221, %p222
      %p224 = scmp.ne.s32.totalorder %s215, %s216
      %p225 = scmp.eq.s32.totalorder %s34, 0
      %p226 = por %p224, %p225
      %p227 = scmp.ne.s32.totalorder %s215, %s216
      %p228 = scmp.eq.s32.totalorder %s35, 1
      %p229 = por %p227, %p228
      %p231 = scmp.ne.s32.totalorder %s216, %s230
      %p232 = scmp.eq.s32.totalorder %s35, 0
      %p233 = por %p231, %p232
      %s235 = sadd.s32 %s234, 1
      %p238 = scmp.eq.s32.totalorder %s29, 1
      %p239 = scmp.ne.s32.totalorder %s234, %s236
      %p240 = scmp.eq.s32.totalorder %s29, 0
      %p241 = por %p239, %p240
      %p242 = scmp.ne.s32.totalorder %s234, %s236
      %p243 = scmp.eq.s32.totalorder %s34, 1
      %p244 = por %p242, %p243
      %p245 = scmp.ne.s32.totalorder %s236, %s237
      %p246 = scmp.eq.s32.totalorder %s34, 0
      %p247 = por %p245, %p246
      %p248 = scmp.ne.s32.totalorder %s236, %s237
      %p249 = scmp.eq.s32.totalorder %s35, 1
      %p250 = por %p248, %p249
      %p252 = scmp.ne.s32.totalorder %s237, %s251
      %p253 = scmp.eq.s32.totalorder %s35, 0
      %p254 = por %p252, %p253
      %s256 = sadd.s32 %s255, 1
      %p259 = scmp.eq.s32.totalorder %s29, 1
      %p260 = scmp.ne.s32.totalorder %s255, %s257
      %p261 = scmp.eq.s32.totalorder %s29, 0
      %p262 = por %p260, %p261
      %p263 = scmp.ne.s32.totalorder %s255, %s257
      %p264 = scmp.eq.s32.totalorder %s34, 1
      %p265 = por %p263, %p264
      %p266 = scmp.ne.s32.totalorder %s257, %s258
      %p267 = scmp.eq.s32.totalorder %s34, 0
      %p268 = por %p266, %p267
      %p269 = scmp.ne.s32.totalorder %s257, %s258
      %p270 = scmp.eq.s32.totalorder %s35, 1
      %p271 = por %p269, %p270
      %p273 = scmp.ne.s32.totalorder %s258, %s272
      %p274 = scmp.eq.s32.totalorder %s35, 0
      %p275 = por %p273, %p274
      %s277 = sadd.s32 %s276, 1
      %p280 = scmp.eq.s32.totalorder %s29, 1
      %p281 = scmp.ne.s32.totalorder %s276, %s278
      %p282 = scmp.eq.s32.totalorder %s29, 0
      %p283 = por %p281, %p282
      %p284 = scmp.ne.s32.totalorder %s276, %s278
      %p285 = scmp.eq.s32.totalorder %s34, 1
      %p286 = por %p284, %p285
      %p287 = scmp.ne.s32.totalorder %s278, %s279
      %p288 = scmp.eq.s32.totalorder %s34, 0
      %p289 = por %p287, %p288
      %p290 = scmp.ne.s32.totalorder %s278, %s279
      %p291 = scmp.eq.s32.totalorder %s35, 1
      %p292 = por %p290, %p291
      %p294 = scmp.ne.s32.totalorder %s279, %s293
      %p295 = scmp.eq.s32.totalorder %s35, 0
      %p296 = por %p294, %p295
      %s298 = sadd.s32 %s297, 1
      %p301 = scmp.eq.s32.totalorder %s29, 1
      %p302 = scmp.ne.s32.totalorder %s297, %s299
      %p303 = scmp.eq.s32.totalorder %s29, 0
      %p304 = por %p302, %p303
      %p305 = scmp.ne.s32.totalorder %s297, %s299
      %p306 = scmp.eq.s32.totalorder %s34, 1
      %p307 = por %p305, %p306
      %p308 = scmp.ne.s32.totalorder %s299, %s300
      %p309 = scmp.eq.s32.totalorder %s34, 0
      %p310 = por %p308, %p309
      %p311 = scmp.ne.s32.totalorder %s299, %s300
      %p312 = scmp.eq.s32.totalorder %s35, 1
      %p313 = por %p311, %p312
      %p315 = scmp.ne.s32.totalorder %s300, %s314
      %p316 = scmp.eq.s32.totalorder %s35, 0
      %p317 = por %p315, %p316
      %s318 = ssub.s32 %s36, %s48
      %s319 = ssub.s32 %s37, %s44
      %s320 = sor.u32 %s318, %s319
      %p321 = scmp.eq.s32.totalorder %s320, 0
      %s323 = sadd.s32 %s322, 1
      %s324 = scalar_select %p321, %s322, %s323
      %p327 = pneg %p321
      %p328 = scmp.eq.s32.totalorder %s29, 1
      %p329 = por %p327, %p328
      %p330 = scmp.ne.s32.totalorder %s322, %s325
      %p331 = scmp.eq.s32.totalorder %s29, 0
      %p332 = por %p330, %p331
      %p333 = scmp.ne.s32.totalorder %s322, %s325
      %p334 = scmp.eq.s32.totalorder %s34, 1
      %p335 = por %p333, %p334
      %p336 = scmp.ne.s32.totalorder %s325, %s326
      %p337 = scmp.eq.s32.totalorder %s34, 0
      %p338 = por %p336, %p337
      %p339 = scmp.ne.s32.totalorder %s325, %s326
      %p340 = scmp.eq.s32.totalorder %s35, 1
      %p341 = por %p339, %p340
      %p343 = scmp.ne.s32.totalorder %s326, %s342
      %p344 = scmp.eq.s32.totalorder %s35, 0
      %p345 = por %p343, %p344
      %p346 = scmp.le.s32.totalorder 1, %s29
      %p347 = scmp.lt.s32.totalorder %s29, 3
      %p348 = pnand %p346, %p347
      %p349 = pneg %p348
      // Predicated region
      $region9: #{tpu_custom_call.1} parent=5 // pred_check
        _
      $region10: #{tpu_custom_call.1} parent=5 // pred_check_branch
        %351 = sbr.rel (%p348) target = $region12
      $region11: #{tpu_custom_call.1} parent=5 // pred_region
        %s352 = ssub.s32 %s29, 1
        // Predicated region
        $region13: #{tpu_custom_call.1} parent=11 // pred_check
          %p353 = pneg %p62
        $region14: #{tpu_custom_call.1} parent=11 // pred_check_branch
          %355 = sbr.rel (%p353) target = $region16
        $region15: #{tpu_custom_call.1} parent=11 // pred_region
          %s357 = ssub.s32 16, 16
          %358 = vsyncadd [#allocation7], %s357
          %361 = dma.hbm_to_smem %s0, 16, [#allocation4], [#allocation7]
        $region16: #{tpu_custom_call.1} parent=11 // pred_fallthru
          _
        // Predicated region
        $region17: #{tpu_custom_call.1} parent=11 // pred_check
          %p362 = pneg %p163
        $region18: #{tpu_custom_call.1} parent=11 // pred_check_branch
          %364 = sbr.rel (%p362) target = $region20
        $region19: #{tpu_custom_call.1} parent=11 // pred_region
          %s366 = ssub.s32 256, 256
          %367 = vsyncadd [#allocation13], %s366
          %s368 = sshll.u32 [#allocation12], 4
          %s369 = int_to_ptr.vmem [resolvable:$true] %s368
          %374 = dma.hbm_to_vmem [thread:$0]  %s4, 256, %s369, [#allocation13], 64, 64, 4
        $region20: #{tpu_custom_call.1} parent=11 // pred_fallthru
          _
        // Predicated region
        $region21: #{tpu_custom_call.1} parent=11 // pred_check
          %p375 = pneg %p184
        $region22: #{tpu_custom_call.1} parent=11 // pred_check_branch
          %377 = sbr.rel (%p375) target = $region24
        $region23: #{tpu_custom_call.1} parent=11 // pred_region
          _
        $region24: #{tpu_custom_call.1} parent=11 // pred_fallthru
          _
        // Predicated region
        $region25: #{tpu_custom_call.1} parent=11 // pred_check
          %p378 = pneg %p205
        $region26: #{tpu_custom_call.1} parent=11 // pred_check_branch
          %380 = sbr.rel (%p378) target = $region28
        $region27: #{tpu_custom_call.1} parent=11 // pred_region
          _
        $region28: #{tpu_custom_call.1} parent=11 // pred_fallthru
          _
        // Predicated region
        $region29: #{tpu_custom_call.1} parent=11 // pred_check
          %p381 = pneg %p226
        $region30: #{tpu_custom_call.1} parent=11 // pred_check_branch
          %383 = sbr.rel (%p381) target = $region32
        $region31: #{tpu_custom_call.1} parent=11 // pred_region
          _
        $region32: #{tpu_custom_call.1} parent=11 // pred_fallthru
          _
        // Predicated region
        $region33: #{tpu_custom_call.1} parent=11 // pred_check
          %p384 = pneg %p247
        $region34: #{tpu_custom_call.1} parent=11 // pred_check_branch
          %386 = sbr.rel (%p384) target = $region36
        $region35: #{tpu_custom_call.1} parent=11 // pred_region
          %s388 = ssub.s32 256, 256
          %389 = vsyncadd [#allocation13], %s388
          %s390 = sshll.u32 [#allocation14], 4
          %s391 = int_to_ptr.vmem [resolvable:$true] %s390
          %396 = dma.hbm_to_vmem [thread:$0]  %s8, 256, %s391, [#allocation13], 64, 64, 4
        $region36: #{tpu_custom_call.1} parent=11 // pred_fallthru
          _
        // Predicated region
        $region37: #{tpu_custom_call.1} parent=11 // pred_check
          %p397 = pneg %p268
        $region38: #{tpu_custom_call.1} parent=11 // pred_check_branch
          %399 = sbr.rel (%p397) target = $region40
        $region39: #{tpu_custom_call.1} parent=11 // pred_region
          _
        $region40: #{tpu_custom_call.1} parent=11 // pred_fallthru
          _
        // Predicated region
        $region41: #{tpu_custom_call.1} parent=11 // pred_check
          %p400 = pneg %p289
        $region42: #{tpu_custom_call.1} parent=11 // pred_check_branch
          %402 = sbr.rel (%p400) target = $region44
        $region43: #{tpu_custom_call.1} parent=11 // pred_region
          _
        $region44: #{tpu_custom_call.1} parent=11 // pred_fallthru
          _
        // Predicated region
        $region45: #{tpu_custom_call.1} parent=11 // pred_check
          %p403 = pneg %p310
        $region46: #{tpu_custom_call.1} parent=11 // pred_check_branch
          %405 = sbr.rel (%p403) target = $region48
        $region47: #{tpu_custom_call.1} parent=11 // pred_region
          _
        $region48: #{tpu_custom_call.1} parent=11 // pred_fallthru
          _
      $region12: #{tpu_custom_call.1} parent=5 // pred_fallthru
        _
      %p406 = scmp.lt.s32.totalorder %s29, 2
      // Predicated region
      $region49: #{tpu_custom_call.1} parent=5 // pred_check
        %p407 = pneg %p406
      $region50: #{tpu_custom_call.1} parent=5 // pred_check_branch
        %409 = sbr.rel (%p407) target = $region52
      $region51: #{tpu_custom_call.1} parent=5 // pred_region
        // Predicated region
        $region53: #{tpu_custom_call.1} parent=51 // pred_check
          %p410 = pneg %p84
        $region54: #{tpu_custom_call.1} parent=51 // pred_check_branch
          %412 = sbr.rel (%p410) target = $region56
        $region55: #{tpu_custom_call.1} parent=51 // pred_region
          %s413 = sand.u32 %s74, 1
          %s414 = scalar_lea.sflag [#allocation5], %s413
          %s415 = sand.u32 %s74, 1
          %s416 = smul.addr %s415, 8
          %s417 = scalar_lea.vmem [#allocation8], %s416
          %s419 = ssub.s32 128, 128
          %420 = vsyncadd %s414, %s419
          %s421 = sadd.s32 %s37, %s36
          %s422 = smul.addr %s421, 128
          %s423 = scalar_lea.hbm %s1, %s422
          %s425 = sshll.u32 %s417, 4
          %s426 = int_to_ptr.vmem [resolvable:$true] %s425
          %428 = dma.hbm_to_vmem [thread:$0]  %s423, 128, %s426, %s414
        $region56: #{tpu_custom_call.1} parent=51 // pred_fallthru
          _
        // Predicated region
        $region57: #{tpu_custom_call.1} parent=51 // pred_check
          %p429 = pneg %p110
        $region58: #{tpu_custom_call.1} parent=51 // pred_check_branch
          %431 = sbr.rel (%p429) target = $region60
        $region59: #{tpu_custom_call.1} parent=51 // pred_region
          %s432 = sand.u32 %s29, 1
          %s433 = scalar_lea.sflag [#allocation10], %s432
          %s434 = sand.u32 %s100, 1
          %s435 = smul.addr %s434, 8
          %s436 = scalar_lea.vmem [#allocation9], %s435
          %s438 = ssub.s32 128, 128
          %439 = vsyncadd %s433, %s438
          %s440 = smul.addr %s36, 128
          %s441 = scalar_lea.hbm %s2, %s440
          %s443 = sshll.u32 %s436, 4
          %s444 = int_to_ptr.vmem [resolvable:$true] %s443
          %446 = dma.hbm_to_vmem [thread:$0]  %s441, 128, %s444, %s433
        $region60: #{tpu_custom_call.1} parent=51 // pred_fallthru
          _
        // Predicated region
        $region61: #{tpu_custom_call.1} parent=51 // pred_check
          %p447 = pneg %p136
        $region62: #{tpu_custom_call.1} parent=51 // pred_check_branch
          %449 = sbr.rel (%p447) target = $region64
        $region63: #{tpu_custom_call.1} parent=51 // pred_region
          %s450 = sand.u32 %s29, 1
          %s451 = scalar_lea.sflag [#allocation10], %s450
          %s452 = sand.u32 %s126, 1
          %s453 = smul.addr %s452, 8
          %s454 = scalar_lea.vmem [#allocation11], %s453
          %s456 = ssub.s32 128, 128
          %457 = vsyncadd %s451, %s456
          %s458 = smul.addr %s36, 128
          %s459 = scalar_lea.hbm %s3, %s458
          %s461 = sshll.u32 %s454, 4
          %s462 = int_to_ptr.vmem [resolvable:$true] %s461
          %464 = dma.hbm_to_vmem [thread:$0]  %s459, 128, %s462, %s451
        $region64: #{tpu_custom_call.1} parent=51 // pred_fallthru
          _
      $region52: #{tpu_custom_call.1} parent=5 // pred_fallthru
        _
      %p465 = scmp.le.s32.totalorder 1, %s29
      %p466 = scmp.lt.s32.totalorder %s29, 3
      %p467 = pnand %p465, %p466
      %p468 = pneg %p467
      // Predicated region
      $region65: #{tpu_custom_call.1} parent=5 // pred_check
        _
      $region66: #{tpu_custom_call.1} parent=5 // pred_check_branch
        %470 = sbr.rel (%p467) target = $region68
      $region67: #{tpu_custom_call.1} parent=5 // pred_region
        %s471 = ssub.s32 %s29, 1
        // Predicated region
        $region69: #{tpu_custom_call.1} parent=67 // pred_check
          %p472 = pneg %p62
        $region70: #{tpu_custom_call.1} parent=67 // pred_check_branch
          %474 = sbr.rel (%p472) target = $region72
        $region71: #{tpu_custom_call.1} parent=67 // pred_region
          %475 = dma.done [#allocation7], 16
        $region72: #{tpu_custom_call.1} parent=67 // pred_fallthru
          _
        %s476 = sand.u32 %s77, 1
        %s477 = scalar_lea.sflag [#allocation5], %s476
        %s478 = sand.u32 %s77, 1
        %s479 = smul.addr %s478, 8
        %s480 = scalar_lea.vmem [#allocation8], %s479
        // Predicated region
        $region73: #{tpu_custom_call.1} parent=67 // pred_check
          %p481 = pneg %p90
        $region74: #{tpu_custom_call.1} parent=67 // pred_check_branch
          %483 = sbr.rel (%p481) target = $region76
        $region75: #{tpu_custom_call.1} parent=67 // pred_region
          %484 = dma.done %s477, 128
        $region76: #{tpu_custom_call.1} parent=67 // pred_fallthru
          _
        %s485 = sand.u32 %s34, 1
        %s486 = scalar_lea.sflag [#allocation10], %s485
        %s487 = sand.u32 %s103, 1
        %s488 = smul.addr %s487, 8
        %s489 = scalar_lea.vmem [#allocation9], %s488
        // Predicated region
        $region77: #{tpu_custom_call.1} parent=67 // pred_check
          %p490 = pneg %p116
        $region78: #{tpu_custom_call.1} parent=67 // pred_check_branch
          %492 = sbr.rel (%p490) target = $region80
        $region79: #{tpu_custom_call.1} parent=67 // pred_region
          %493 = dma.done %s486, 128
        $region80: #{tpu_custom_call.1} parent=67 // pred_fallthru
          _
        %s494 = sand.u32 %s34, 1
        %s495 = scalar_lea.sflag [#allocation10], %s494
        %s496 = sand.u32 %s129, 1
        %s497 = smul.addr %s496, 8
        %s498 = scalar_lea.vmem [#allocation11], %s497
        // Predicated region
        $region81: #{tpu_custom_call.1} parent=67 // pred_check
          %p499 = pneg %p142
        $region82: #{tpu_custom_call.1} parent=67 // pred_check_branch
          %501 = sbr.rel (%p499) target = $region84
        $region83: #{tpu_custom_call.1} parent=67 // pred_region
          %502 = dma.done %s495, 128
        $region84: #{tpu_custom_call.1} parent=67 // pred_fallthru
          _
        // Predicated region
        $region85: #{tpu_custom_call.1} parent=67 // pred_check
          %p503 = pneg %p163
        $region86: #{tpu_custom_call.1} parent=67 // pred_check_branch
          %505 = sbr.rel (%p503) target = $region88
        $region87: #{tpu_custom_call.1} parent=67 // pred_region
          %506 = dma.done [#allocation13], 256
        $region88: #{tpu_custom_call.1} parent=67 // pred_fallthru
          _
        // Predicated region
        $region89: #{tpu_custom_call.1} parent=67 // pred_check
          %p507 = pneg %p247
        $region90: #{tpu_custom_call.1} parent=67 // pred_check_branch
          %509 = sbr.rel (%p507) target = $region92
        $region91: #{tpu_custom_call.1} parent=67 // pred_region
          %510 = dma.done [#allocation13], 256
        $region92: #{tpu_custom_call.1} parent=67 // pred_fallthru
          _
        %511 = sfence
        %p512 = pneg %p62
        %p513 = pneg %p59
        %s514 = sand.u32 %s77, 1
        %s515 = scalar_lea.sflag [#allocation5], %s514
        %s516 = sand.u32 %s77, 1
        %s517 = smul.addr %s516, 8
        %s518 = scalar_lea.vmem [#allocation8], %s517
        %p519 = pneg %p90
        %p520 = pneg %p87
        %s521 = sand.u32 %s34, 1
        %s522 = scalar_lea.sflag [#allocation10], %s521
        %s523 = sand.u32 %s103, 1
        %s524 = smul.addr %s523, 8
        %s525 = scalar_lea.vmem [#allocation9], %s524
        %p526 = pneg %p116
        %p527 = pneg %p113
        %s528 = sand.u32 %s34, 1
        %s529 = scalar_lea.sflag [#allocation10], %s528
        %s530 = sand.u32 %s129, 1
        %s531 = smul.addr %s530, 8
        %s532 = scalar_lea.vmem [#allocation11], %s531
        %p533 = pneg %p142
        %p534 = pneg %p139
        %p535 = pneg %p163
        %p536 = pneg %p160
        %p537 = pneg %p184
        %p538 = pneg %p181
        %p539 = pneg %p205
        %p540 = pneg %p202
        %p541 = pneg %p226
        %p542 = pneg %p223
        %p543 = pneg %p247
        %p544 = pneg %p244
        %p545 = pneg %p268
        %p546 = pneg %p265
        %p547 = pneg %p289
        %p548 = pneg %p286
        %p549 = pneg %p310
        %p550 = pneg %p307
        %p551 = pneg %p338
        %p552 = pneg %p335
        %s553 = sand.u32 %s325, 1
        %s554 = scalar_lea.sflag [#allocation6], %s553
        %s555 = sand.u32 %s325, 1
        %s556 = smul.addr %s555, 8
        %s557 = scalar_lea.vmem [#allocation15], %s556
        %s559 = smul.u32 %s39, 8
        %p560 = scmp.eq.s32.totalorder %s39, 0
        // Predicated region
        $region93: #{tpu_custom_call.1} parent=67 // pred_check
          %p561 = pneg %p560
        $region94: #{tpu_custom_call.1} parent=67 // pred_check_branch
          %563 = sbr.rel (%p561) target = $region96
        $region95: #{tpu_custom_call.1} parent=67 // pred_region
          %v564 = vld [vmem:[%s489] sm:$0xff]
          %v565 = vpack.c.bf16 %v564, %v564
          %v566 = vld [vmem:[%s498] sm:$0xff]
          %v567 = vpack.c.bf16 %v566, %v566
          %v568 = vld [vmem:[#allocation12] sm:$0xf]
          %v569 = vld [vmem:[#allocation12 + $0x4] sm:$0xf]
          %v570 = vld [vmem:[#allocation12 + $0x8] sm:$0xf]
          %v571 = vld [vmem:[#allocation12 + $0xc] sm:$0xf]
          %v572 = vld [vmem:[%s5] sm:$0x1]
          %v574 = vlaneseq
          %v575 = vshrl.u32 %v574, 7
          %v576 = vsub.s32 0, %v575
          %v577 = vrot.slane %v572, %v576
          %v583 = vunpack.c.l.b16 %v568
          %v584 = vunpack.c.l.b16 %v569
          %v585 = vunpack.c.l.b16 %v570
          %v586 = vunpack.c.l.b16 %v571
          %v587 = vpack.c.b16 %v584, %v583
          %v588 = vpack.c.b16 %v586, %v585
          %vm591 = vcmask 261120
          %v593 = vsel %vm591, %v565, 0
          %595 = vmatprep.subr.bf16.mxu0 0
          %596 = vmatpush1.bf16.msra.mxu0 %v587
          %597 = vmatprep.subr.bf16.mxu0 0
          %598 = vmatpush1.bf16.msra.mxu0 %v588
          %599 = vmatprep.subr.bf16.mxu0 0
          %600 = vmatpush1.bf16.msra.mxu0 0
          %601 = vmatprep.subr.bf16.mxu0 0
          %602 = vmatpush1.bf16.msra.mxu0 0
          %603 = vmatprep.subr.bf16.mxu0 0
          %604 = vmatpush1.bf16.msra.mxu0 0
          %605 = vmatprep.subr.bf16.mxu0 0
          %606 = vmatpush1.bf16.msra.mxu0 0
          %607 = vmatprep.subr.bf16.mxu0 0
          %608 = vmatpush1.bf16.msra.mxu0 0
          %609 = vmatprep.subr.bf16.mxu0 0
          %610 = vmatpush1.bf16.msra.mxu0 0
          %611 = vmatprep.subr.bf16.mxu0 0
          %612 = vmatpush1.bf16.msra.mxu0 0
          %613 = vmatprep.subr.bf16.mxu0 0
          %614 = vmatpush1.bf16.msra.mxu0 0
          %615 = vmatprep.subr.bf16.mxu0 0
          %616 = vmatpush1.bf16.msra.mxu0 0
          %617 = vmatprep.subr.bf16.mxu0 0
          %618 = vmatpush1.bf16.msra.mxu0 0
          %619 = vmatprep.subr.bf16.mxu0 0
          %620 = vmatpush1.bf16.msra.mxu0 0
          %621 = vmatprep.subr.bf16.mxu0 0
          %622 = vmatpush1.bf16.msra.mxu0 0
          %623 = vmatprep.subr.bf16.mxu0 0
          %624 = vmatpush1.bf16.msra.mxu0 0
          %625 = vmatprep.subr.bf16.mxu0 0
          %626 = vmatpush1.bf16.msra.mxu0 0
          %627 = vmatprep.mubr.bf16.mxu0 0
          %628 = vmatmul.mubr.bf16.gmra.mrb[0].mxu0 %v593
          %v629 = vpop.f32.mrb[0].mxu0
          %v630 = vadd.f32 %v577, %v629
          %v631 = vpop.f32.mrb[0].mxu0
          %v632 = vpop.f32.mrb[0].mxu0
          %v633 = vpop.f32.mrb[0].mxu0
          %634 = vdwg.mxu0
          %v635 = vpack.c.bf16 %v630, %v630
          %vm636 = vcmask 257024
          %637 = vst.msk [vmem:[#allocation2] sm:$0xf] %vm636, %v635
          %v638 = vld [vmem:[%s6] sm:$0xf]
          %v639 = vld [vmem:[%s6 + $0x4] sm:$0xf]
          %v640 = vld [vmem:[%s6 + $0x8] sm:$0xf]
          %v641 = vld [vmem:[%s6 + $0xc] sm:$0xf]
          %v642 = vld [vmem:[%s7] sm:$0x1]
          %v644 = vlaneseq
          %v645 = vshrl.u32 %v644, 7
          %v646 = vsub.s32 0, %v645
          %v647 = vrot.slane %v642, %v646
          %v653 = vunpack.c.l.b16 %v638
          %v654 = vunpack.c.l.b16 %v639
          %v655 = vunpack.c.l.b16 %v640
          %v656 = vunpack.c.l.b16 %v641
          %v657 = vpack.c.b16 %v654, %v653
          %v658 = vpack.c.b16 %v656, %v655
          %v662 = vsel %vm591, %v567, 0
          %664 = vmatprep.subr.bf16.mxu0 0
          %665 = vmatpush1.bf16.msra.mxu0 %v657
          %666 = vmatprep.subr.bf16.mxu0 0
          %667 = vmatpush1.bf16.msra.mxu0 %v658
          %668 = vmatprep.subr.bf16.mxu0 0
          %669 = vmatpush1.bf16.msra.mxu0 0
          %670 = vmatprep.subr.bf16.mxu0 0
          %671 = vmatpush1.bf16.msra.mxu0 0
          %672 = vmatprep.subr.bf16.mxu0 0
          %673 = vmatpush1.bf16.msra.mxu0 0
          %674 = vmatprep.subr.bf16.mxu0 0
          %675 = vmatpush1.bf16.msra.mxu0 0
          %676 = vmatprep.subr.bf16.mxu0 0
          %677 = vmatpush1.bf16.msra.mxu0 0
          %678 = vmatprep.subr.bf16.mxu0 0
          %679 = vmatpush1.bf16.msra.mxu0 0
          %680 = vmatprep.subr.bf16.mxu0 0
          %681 = vmatpush1.bf16.msra.mxu0 0
          %682 = vmatprep.subr.bf16.mxu0 0
          %683 = vmatpush1.bf16.msra.mxu0 0
          %684 = vmatprep.subr.bf16.mxu0 0
          %685 = vmatpush1.bf16.msra.mxu0 0
          %686 = vmatprep.subr.bf16.mxu0 0
          %687 = vmatpush1.bf16.msra.mxu0 0
          %688 = vmatprep.subr.bf16.mxu0 0
          %689 = vmatpush1.bf16.msra.mxu0 0
          %690 = vmatprep.subr.bf16.mxu0 0
          %691 = vmatpush1.bf16.msra.mxu0 0
          %692 = vmatprep.subr.bf16.mxu0 0
          %693 = vmatpush1.bf16.msra.mxu0 0
          %694 = vmatprep.subr.bf16.mxu0 0
          %695 = vmatpush1.bf16.msra.mxu0 0
          %696 = vmatprep.mubr.bf16.mxu0 0
          %697 = vmatmul.mubr.bf16.gmra.mrb[0].mxu0 %v662
          %v698 = vpop.f32.mrb[0].mxu0
          %v699 = vadd.f32 %v647, %v698
          %v700 = vpop.f32.mrb[0].mxu0
          %v701 = vpop.f32.mrb[0].mxu0
          %v702 = vpop.f32.mrb[0].mxu0
          %703 = vdwg.mxu0
          %v704 = vpack.c.bf16 %v699, %v699
          %705 = vst.msk [vmem:[#allocation3] sm:$0xf] %vm636, %v704
        $region96: #{tpu_custom_call.1} parent=67 // pred_fallthru
          _
        %v706 = vld [vmem:[%s480] sm:$0xff]
        %v707 = vpack.c.bf16 %v706, %v706
        %v708 = vld [vmem:[#allocation12] sm:$0xf]
        %v709 = vld [vmem:[#allocation12 + $0x4] sm:$0xf]
        %v710 = vld [vmem:[#allocation12 + $0x8] sm:$0xf]
        %v711 = vld [vmem:[#allocation12 + $0xc] sm:$0xf]
        %v712 = vld [vmem:[%s5] sm:$0x1]
        %v714 = vlaneseq
        %v715 = vshrl.u32 %v714, 7
        %v716 = vsub.s32 0, %v715
        %v717 = vrot.slane %v712, %v716
        %v723 = vunpack.c.l.b16 %v708
        %v724 = vunpack.c.l.b16 %v709
        %v725 = vunpack.c.l.b16 %v710
        %v726 = vunpack.c.l.b16 %v711
        %v727 = vpack.c.b16 %v724, %v723
        %v728 = vpack.c.b16 %v726, %v725
        %vm731 = vcmask 261120
        %v733 = vsel %vm731, %v707, 0
        %735 = vmatprep.subr.bf16.mxu0 0
        %736 = vmatpush1.bf16.msra.mxu0 %v727
        %737 = vmatprep.subr.bf16.mxu0 0
        %738 = vmatpush1.bf16.msra.mxu0 %v728
        %739 = vmatprep.subr.bf16.mxu0 0
        %740 = vmatpush1.bf16.msra.mxu0 0
        %741 = vmatprep.subr.bf16.mxu0 0
        %742 = vmatpush1.bf16.msra.mxu0 0
        %743 = vmatprep.subr.bf16.mxu0 0
        %744 = vmatpush1.bf16.msra.mxu0 0
        %745 = vmatprep.subr.bf16.mxu0 0
        %746 = vmatpush1.bf16.msra.mxu0 0
        %747 = vmatprep.subr.bf16.mxu0 0
        %748 = vmatpush1.bf16.msra.mxu0 0
        %749 = vmatprep.subr.bf16.mxu0 0
        %750 = vmatpush1.bf16.msra.mxu0 0
        %751 = vmatprep.subr.bf16.mxu0 0
        %752 = vmatpush1.bf16.msra.mxu0 0
        %753 = vmatprep.subr.bf16.mxu0 0
        %754 = vmatpush1.bf16.msra.mxu0 0
        %755 = vmatprep.subr.bf16.mxu0 0
        %756 = vmatpush1.bf16.msra.mxu0 0
        %757 = vmatprep.subr.bf16.mxu0 0
        %758 = vmatpush1.bf16.msra.mxu0 0
        %759 = vmatprep.subr.bf16.mxu0 0
        %760 = vmatpush1.bf16.msra.mxu0 0
        %761 = vmatprep.subr.bf16.mxu0 0
        %762 = vmatpush1.bf16.msra.mxu0 0
        %763 = vmatprep.subr.bf16.mxu0 0
        %764 = vmatpush1.bf16.msra.mxu0 0
        %765 = vmatprep.subr.bf16.mxu0 0
        %766 = vmatpush1.bf16.msra.mxu0 0
        %767 = vmatprep.mubr.bf16.mxu0 0
        %768 = vmatmul.mubr.bf16.gmra.mrb[0].mxu0 %v733
        %v769 = vpop.f32.mrb[0].mxu0
        %v770 = vadd.f32 %v717, %v769
        %v771 = vpop.f32.mrb[0].mxu0
        %v772 = vpop.f32.mrb[0].mxu0
        %v773 = vpop.f32.mrb[0].mxu0
        %774 = vdwg.mxu0
        %v775 = vmul.f32 %v770, 0.35355338
        %v776 = vpack.c.bf16 %v775, %v775
        %v777 = vlaneseq
        %v778 = vshrl.u32 %v777, 7
        %v779 = vstv %s559
        %v780 = vadd.s32 %v779, %v778
        %v781 = vlaneseq
        %v782 = vand.u32 %v781, 127
        %v783 = vsub.s32 %v780, 1
        %vm784 = vcmp.le.s32.totalorder %v782, %v783
        %vm785 = vcmp.ne.s32.totalorder %v782, %v780
        %vm786 = vmand %vm784, %vm785
        %v787 = vsel %vm786, 0.0, -1e+32
        %v788 = vsub.s32 %v782, %v780
        %vm789 = vcmp.lt.s32.totalorder %v788, 0
        %v790 = vsub.s32 0, %v788
        %v791 = vsel %vm789, %v790, %v788
        %v792 = vcvt.s32.f32 %v791
        %v793 = vld [vmem:[#allocation2] sm:$0xf]
        %v794 = vld [vmem:[#allocation3] sm:$0xf]
        %vm795 = vcmask 64512
        %v797 = vsel %vm795, %v776, 0
        %v800 = vsel %vm795, %v793, 0
        %802 = vmatprep.subr.bf16.mxu0 0
        %803 = vmatpush1.bf16.xpose.msra.mxu0 %v800
        %804 = vmatprep.subr.bf16.mxu0 0
        %805 = vmatpush1.bf16.xpose.msra.mxu0 0
        %806 = vmatprep.subr.bf16.mxu0 0
        %807 = vmatpush1.bf16.xpose.msra.mxu0 0
        %808 = vmatprep.subr.bf16.mxu0 0
        %809 = vmatpush1.bf16.xpose.msra.mxu0 0
        %810 = vmatprep.subr.bf16.mxu0 0
        %811 = vmatpush1.bf16.xpose.msra.mxu0 0
        %812 = vmatprep.subr.bf16.mxu0 0
        %813 = vmatpush1.bf16.xpose.msra.mxu0 0
        %814 = vmatprep.subr.bf16.mxu0 0
        %815 = vmatpush1.bf16.xpose.msra.mxu0 0
        %816 = vmatprep.subr.bf16.mxu0 0
        %817 = vmatpush1.bf16.xpose.msra.mxu0 0
        %818 = vmatprep.subr.bf16.mxu0 0
        %819 = vmatpush1.bf16.xpose.msra.mxu0 0
        %820 = vmatprep.subr.bf16.mxu0 0
        %821 = vmatpush1.bf16.xpose.msra.mxu0 0
        %822 = vmatprep.subr.bf16.mxu0 0
        %823 = vmatpush1.bf16.xpose.msra.mxu0 0
        %824 = vmatprep.subr.bf16.mxu0 0
        %825 = vmatpush1.bf16.xpose.msra.mxu0 0
        %826 = vmatprep.subr.bf16.mxu0 0
        %827 = vmatpush1.bf16.xpose.msra.mxu0 0
        %828 = vmatprep.subr.bf16.mxu0 0
        %829 = vmatpush1.bf16.xpose.msra.mxu0 0
        %830 = vmatprep.subr.bf16.mxu0 0
        %831 = vmatpush1.bf16.xpose.msra.mxu0 0
        %832 = vmatprep.subr.bf16.mxu0 0
        %833 = vmatpush1.bf16.xpose.msra.mxu0 0
        %834 = vmatprep.mubr.bf16.mxu0 0
        %835 = vmatmul.mubr.bf16.gmra.mrb[0].mxu0 %v797
        %v836 = vpop.f32.mrb[0].mxu0
        %v837 = vadd.f32 0.0, %v836
        %v838 = vpop.f32.mrb[0].mxu0
        %v839 = vpop.f32.mrb[0].mxu0
        %v840 = vpop.f32.mrb[0].mxu0
        %841 = vdwg.mxu0
        %v842 = vadd.f32 %v837, %v787
        %v843 = vsel %vm795, %v842, -inf
        %844 = vmax.xlane.f32.xlu0 %v843
        %v845 = vpop.xlane.xlu0 %844
        %v846 = vsub.f32 %v842, %v845
        %v847 = vmul.f32 %v846, 1.442695
        %v848 = vpow.pop %v847
        %v849 = vsel %vm795, %v848, 0.0
        %850 = vadd.xlane.f32.xlu0 %v849
        %v851 = vpop.xlane.xlu0 %850
        %v852 = vrcp.pop %v851
        %v853 = vmul.f32 %v848, %v852
        %v854 = vsel %vm795, %v853, 0.0
        %855 = vadd.xlane.f32.xlu0 %v854
        %v856 = vpop.xlane.xlu0 %855
        %858 = vrot.lane.b32.xlu0 %v853, 1
        %v859 = vpop.permute.xlu0 %858
        %vm861 = vcmask 7168
        %v862 = vsel %vm861, 0.0, %v859
        %v863 = vadd.f32 %v853, %v862
        %865 = vrot.lane.b32.xlu0 %v863, 2
        %v866 = vpop.permute.xlu0 %865
        %vm868 = vcmask 15360
        %v869 = vsel %vm868, 0.0, %v866
        %v870 = vadd.f32 %v863, %v869
        %872 = vrot.lane.b32.xlu0 %v870, 4
        %v873 = vpop.permute.xlu0 %872
        %vm875 = vcmask 31744
        %v876 = vsel %vm875, 0.0, %v873
        %v877 = vadd.f32 %v870, %v876
        %v878 = vsub.f32 %v856, %v877
        %v879 = vmul.f32 %v878, %v792
        %v880 = vmax.f32 %v879, 0.0
        %v881 = vrsqrt.pop %v880
        %v882 = vmul.f32 %v880, %v881
        %vm883 = vcmp.eq.f32.partialorder %v880, inf
        %v884 = vsel %vm883, %v880, %v882
        %vm885 = vcmp.eq.f32.partialorder %v880, 0.0
        %v886 = vand.u32 %v880, 2147483648
        %v887 = vsel %vm885, %v886, %v884
        %s888 = sld [smem:[#allocation4]]
        %v889 = vstv %s888
        %v890 = vmul.f32 %v887, %v889
        %v891 = vmax.f32 %v890, -11.512925
        %v892 = vmul.f32 %v891, 1.442695
        %v893 = vpow.pop %v892
        %v894 = vmul.f32 %v837, %v893
        %v895 = vadd.f32 %v894, %v787
        %v896 = vsel %vm795, %v895, -inf
        %897 = vmax.xlane.f32.xlu0 %v896
        %v898 = vpop.xlane.xlu0 %897
        %v899 = vsub.f32 %v895, %v898
        %v900 = vmul.f32 %v899, 1.442695
        %v901 = vpow.pop %v900
        %v902 = vsel %vm795, %v901, 0.0
        %903 = vadd.xlane.f32.xlu0 %v902
        %v904 = vpop.xlane.xlu0 %903
        %v905 = vrcp.pop %v904
        %v906 = vmul.f32 %v901, %v905
        %v907 = vsel %vm786, %v906, 0.0
        %v908 = vpack.c.bf16 %v907, %v907
        %v910 = vsel %vm795, %v908, 0
        %vm912 = vcmask 1043456
        %v914 = vsel %vm912, %v794, 0
        %916 = vmatprep.subr.bf16.mxu0 0
        %917 = vmatpush1.bf16.msra.mxu0 %v914
        %918 = vmatprep.subr.bf16.mxu0 0
        %919 = vmatpush1.bf16.msra.mxu0 0
        %920 = vmatprep.subr.bf16.mxu0 0
        %921 = vmatpush1.bf16.msra.mxu0 0
        %922 = vmatprep.subr.bf16.mxu0 0
        %923 = vmatpush1.bf16.msra.mxu0 0
        %924 = vmatprep.subr.bf16.mxu0 0
        %925 = vmatpush1.bf16.msra.mxu0 0
        %926 = vmatprep.subr.bf16.mxu0 0
        %927 = vmatpush1.bf16.msra.mxu0 0
        %928 = vmatprep.subr.bf16.mxu0 0
        %929 = vmatpush1.bf16.msra.mxu0 0
        %930 = vmatprep.subr.bf16.mxu0 0
        %931 = vmatpush1.bf16.msra.mxu0 0
        %932 = vmatprep.subr.bf16.mxu0 0
        %933 = vmatpush1.bf16.msra.mxu0 0
        %934 = vmatprep.subr.bf16.mxu0 0
        %935 = vmatpush1.bf16.msra.mxu0 0
        %936 = vmatprep.subr.bf16.mxu0 0
        %937 = vmatpush1.bf16.msra.mxu0 0
        %938 = vmatprep.subr.bf16.mxu0 0
        %939 = vmatpush1.bf16.msra.mxu0 0
        %940 = vmatprep.subr.bf16.mxu0 0
        %941 = vmatpush1.bf16.msra.mxu0 0
        %942 = vmatprep.subr.bf16.mxu0 0
        %943 = vmatpush1.bf16.msra.mxu0 0
        %944 = vmatprep.subr.bf16.mxu0 0
        %945 = vmatpush1.bf16.msra.mxu0 0
        %946 = vmatprep.subr.bf16.mxu0 0
        %947 = vmatpush1.bf16.msra.mxu0 0
        %948 = vmatprep.mubr.bf16.mxu0 0
        %949 = vmatmul.mubr.bf16.gmra.mrb[0].mxu0 %v910
        %v950 = vpop.f32.mrb[0].mxu0
        %v951 = vadd.f32 0.0, %v950
        %v952 = vpop.f32.mrb[0].mxu0
        %v953 = vpop.f32.mrb[0].mxu0
        %v954 = vpop.f32.mrb[0].mxu0
        %955 = vdwg.mxu0
        %957 = vrot.lane.b32.xlu0 %v776, 120
        %v958 = vpop.permute.xlu0 %957
        %v960 = vunpack.c.l.b16 %v793
        %v961 = vpack.c.b16 %v960, %v960
        %962 = vrot.lane.b32.xlu0 %v961, 120
        %v963 = vpop.permute.xlu0 %962
        %v965 = vsel %vm795, %v958, 0
        %v968 = vsel %vm795, %v963, 0
        %970 = vmatprep.subr.bf16.mxu0 0
        %971 = vmatpush1.bf16.xpose.msra.mxu0 %v968
        %972 = vmatprep.subr.bf16.mxu0 0
        %973 = vmatpush1.bf16.xpose.msra.mxu0 0
        %974 = vmatprep.subr.bf16.mxu0 0
        %975 = vmatpush1.bf16.xpose.msra.mxu0 0
        %976 = vmatprep.subr.bf16.mxu0 0
        %977 = vmatpush1.bf16.xpose.msra.mxu0 0
        %978 = vmatprep.subr.bf16.mxu0 0
        %979 = vmatpush1.bf16.xpose.msra.mxu0 0
        %980 = vmatprep.subr.bf16.mxu0 0
        %981 = vmatpush1.bf16.xpose.msra.mxu0 0
        %982 = vmatprep.subr.bf16.mxu0 0
        %983 = vmatpush1.bf16.xpose.msra.mxu0 0
        %984 = vmatprep.subr.bf16.mxu0 0
        %985 = vmatpush1.bf16.xpose.msra.mxu0 0
        %986 = vmatprep.subr.bf16.mxu0 0
        %987 = vmatpush1.bf16.xpose.msra.mxu0 0
        %988 = vmatprep.subr.bf16.mxu0 0
        %989 = vmatpush1.bf16.xpose.msra.mxu0 0
        %990 = vmatprep.subr.bf16.mxu0 0
        %991 = vmatpush1.bf16.xpose.msra.mxu0 0
        %992 = vmatprep.subr.bf16.mxu0 0
        %993 = vmatpush1.bf16.xpose.msra.mxu0 0
        %994 = vmatprep.subr.bf16.mxu0 0
        %995 = vmatpush1.bf16.xpose.msra.mxu0 0
        %996 = vmatprep.subr.bf16.mxu0 0
        %997 = vmatpush1.bf16.xpose.msra.mxu0 0
        %998 = vmatprep.subr.bf16.mxu0 0
        %999 = vmatpush1.bf16.xpose.msra.mxu0 0
        %1000 = vmatprep.subr.bf16.mxu0 0
        %1001 = vmatpush1.bf16.xpose.msra.mxu0 0
        %1002 = vmatprep.mubr.bf16.mxu0 0
        %1003 = vmatmul.mubr.bf16.gmra.mrb[0].mxu0 %v965
        %v1004 = vpop.f32.mrb[0].mxu0
        %v1005 = vadd.f32 0.0, %v1004
        %v1006 = vpop.f32.mrb[0].mxu0
        %v1007 = vpop.f32.mrb[0].mxu0
        %v1008 = vpop.f32.mrb[0].mxu0
        %1009 = vdwg.mxu0
        %v1010 = vadd.f32 %v1005, %v787
        %v1011 = vsel %vm795, %v1010, -inf
        %1012 = vmax.xlane.f32.xlu0 %v1011
        %v1013 = vpop.xlane.xlu0 %1012
        %v1014 = vsub.f32 %v1010, %v1013
        %v1015 = vmul.f32 %v1014, 1.442695
        %v1016 = vpow.pop %v1015
        %v1017 = vsel %vm795, %v1016, 0.0
        %1018 = vadd.xlane.f32.xlu0 %v1017
        %v1019 = vpop.xlane.xlu0 %1018
        %v1020 = vrcp.pop %v1019
        %v1021 = vmul.f32 %v1016, %v1020
        %v1022 = vsel %vm795, %v1021, 0.0
        %1023 = vadd.xlane.f32.xlu0 %v1022
        %v1024 = vpop.xlane.xlu0 %1023
        %1026 = vrot.lane.b32.xlu0 %v1021, 1
        %v1027 = vpop.permute.xlu0 %1026
        %v1029 = vsel %vm861, 0.0, %v1027
        %v1030 = vadd.f32 %v1021, %v1029
        %1032 = vrot.lane.b32.xlu0 %v1030, 2
        %v1033 = vpop.permute.xlu0 %1032
        %v1035 = vsel %vm868, 0.0, %v1033
        %v1036 = vadd.f32 %v1030, %v1035
        %1038 = vrot.lane.b32.xlu0 %v1036, 4
        %v1039 = vpop.permute.xlu0 %1038
        %v1041 = vsel %vm875, 0.0, %v1039
        %v1042 = vadd.f32 %v1036, %v1041
        %v1043 = vsub.f32 %v1024, %v1042
        %v1044 = vmul.f32 %v1043, %v792
        %v1045 = vmax.f32 %v1044, 0.0
        %v1046 = vrsqrt.pop %v1045
        %v1047 = vmul.f32 %v1045, %v1046
        %vm1048 = vcmp.eq.f32.partialorder %v1045, inf
        %v1049 = vsel %vm1048, %v1045, %v1047
        %vm1050 = vcmp.eq.f32.partialorder %v1045, 0.0
        %v1051 = vand.u32 %v1045, 2147483648
        %v1052 = vsel %vm1050, %v1051, %v1049
        %s1053 = sld [smem:[#allocation4 + $0x1]]
        %v1054 = vstv %s1053
        %v1055 = vmul.f32 %v1052, %v1054
        %v1056 = vmax.f32 %v1055, -11.512925
        %v1057 = vmul.f32 %v1056, 1.442695
        %v1058 = vpow.pop %v1057
        %v1059 = vmul.f32 %v1005, %v1058
        %v1060 = vadd.f32 %v1059, %v787
        %v1061 = vsel %vm795, %v1060, -inf
        %1062 = vmax.xlane.f32.xlu0 %v1061
        %v1063 = vpop.xlane.xlu0 %1062
        %v1064 = vsub.f32 %v1060, %v1063
        %v1065 = vmul.f32 %v1064, 1.442695
        %v1066 = vpow.pop %v1065
        %v1067 = vsel %vm795, %v1066, 0.0
        %1068 = vadd.xlane.f32.xlu0 %v1067
        %v1069 = vpop.xlane.xlu0 %1068
        %v1070 = vrcp.pop %v1069
        %v1071 = vmul.f32 %v1066, %v1070
        %v1072 = vsel %vm786, %v1071, 0.0
        %v1073 = vpack.c.bf16 %v1072, %v1072
        %v1075 = vunpack.c.l.b16 %v794
        %v1076 = vpack.c.b16 %v1075, %v1075
        %1077 = vrot.lane.b32.xlu0 %v1076, 120
        %v1078 = vpop.permute.xlu0 %1077
        %v1080 = vsel %vm795, %v1073, 0
        %v1083 = vsel %vm912, %v1078, 0
        %1085 = vmatprep.subr.bf16.mxu0 0
        %1086 = vmatpush1.bf16.msra.mxu0 %v1083
        %1087 = vmatprep.subr.bf16.mxu0 0
        %1088 = vmatpush1.bf16.msra.mxu0 0
        %1089 = vmatprep.subr.bf16.mxu0 0
        %1090 = vmatpush1.bf16.msra.mxu0 0
        %1091 = vmatprep.subr.bf16.mxu0 0
        %1092 = vmatpush1.bf16.msra.mxu0 0
        %1093 = vmatprep.subr.bf16.mxu0 0
        %1094 = vmatpush1.bf16.msra.mxu0 0
        %1095 = vmatprep.subr.bf16.mxu0 0
        %1096 = vmatpush1.bf16.msra.mxu0 0
        %1097 = vmatprep.subr.bf16.mxu0 0
        %1098 = vmatpush1.bf16.msra.mxu0 0
        %1099 = vmatprep.subr.bf16.mxu0 0
        %1100 = vmatpush1.bf16.msra.mxu0 0
        %1101 = vmatprep.subr.bf16.mxu0 0
        %1102 = vmatpush1.bf16.msra.mxu0 0
        %1103 = vmatprep.subr.bf16.mxu0 0
        %1104 = vmatpush1.bf16.msra.mxu0 0
        %1105 = vmatprep.subr.bf16.mxu0 0
        %1106 = vmatpush1.bf16.msra.mxu0 0
        %1107 = vmatprep.subr.bf16.mxu0 0
        %1108 = vmatpush1.bf16.msra.mxu0 0
        %1109 = vmatprep.subr.bf16.mxu0 0
        %1110 = vmatpush1.bf16.msra.mxu0 0
        %1111 = vmatprep.subr.bf16.mxu0 0
        %1112 = vmatpush1.bf16.msra.mxu0 0
        %1113 = vmatprep.subr.bf16.mxu0 0
        %1114 = vmatpush1.bf16.msra.mxu0 0
        %1115 = vmatprep.subr.bf16.mxu0 0
        %1116 = vmatpush1.bf16.msra.mxu0 0
        %1117 = vmatprep.mubr.bf16.mxu0 0
        %1118 = vmatmul.mubr.bf16.gmra.mrb[0].mxu0 %v1080
        %v1119 = vpop.f32.mrb[0].mxu0
        %v1120 = vadd.f32 0.0, %v1119
        %v1121 = vpop.f32.mrb[0].mxu0
        %v1122 = vpop.f32.mrb[0].mxu0
        %v1123 = vpop.f32.mrb[0].mxu0
        %1124 = vdwg.mxu0
        %1125 = vrot.lane.b32.xlu0 %v776, 112
        %v1126 = vpop.permute.xlu0 %1125
        %1127 = vrot.lane.b32.xlu0 %v961, 112
        %v1128 = vpop.permute.xlu0 %1127
        %v1130 = vsel %vm795, %v1126, 0
        %v1133 = vsel %vm795, %v1128, 0
        %1135 = vmatprep.subr.bf16.mxu0 0
        %1136 = vmatpush1.bf16.xpose.msra.mxu0 %v1133
        %1137 = vmatprep.subr.bf16.mxu0 0
        %1138 = vmatpush1.bf16.xpose.msra.mxu0 0
        %1139 = vmatprep.subr.bf16.mxu0 0
        %1140 = vmatpush1.bf16.xpose.msra.mxu0 0
        %1141 = vmatprep.subr.bf16.mxu0 0
        %1142 = vmatpush1.bf16.xpose.msra.mxu0 0
        %1143 = vmatprep.subr.bf16.mxu0 0
        %1144 = vmatpush1.bf16.xpose.msra.mxu0 0
        %1145 = vmatprep.subr.bf16.mxu0 0
        %1146 = vmatpush1.bf16.xpose.msra.mxu0 0
        %1147 = vmatprep.subr.bf16.mxu0 0
        %1148 = vmatpush1.bf16.xpose.msra.mxu0 0
        %1149 = vmatprep.subr.bf16.mxu0 0
        %1150 = vmatpush1.bf16.xpose.msra.mxu0 0
        %1151 = vmatprep.subr.bf16.mxu0 0
        %1152 = vmatpush1.bf16.xpose.msra.mxu0 0
        %1153 = vmatprep.subr.bf16.mxu0 0
        %1154 = vmatpush1.bf16.xpose.msra.mxu0 0
        %1155 = vmatprep.subr.bf16.mxu0 0
        %1156 = vmatpush1.bf16.xpose.msra.mxu0 0
        %1157 = vmatprep.subr.bf16.mxu0 0
        %1158 = vmatpush1.bf16.xpose.msra.mxu0 0
        %1159 = vmatprep.subr.bf16.mxu0 0
        %1160 = vmatpush1.bf16.xpose.msra.mxu0 0
        %1161 = vmatprep.subr.bf16.mxu0 0
        %1162 = vmatpush1.bf16.xpose.msra.mxu0 0
        %1163 = vmatprep.subr.bf16.mxu0 0
        %1164 = vmatpush1.bf16.xpose.msra.mxu0 0
        %1165 = vmatprep.subr.bf16.mxu0 0
        %1166 = vmatpush1.bf16.xpose.msra.mxu0 0
        %1167 = vmatprep.mubr.bf16.mxu0 0
        %1168 = vmatmul.mubr.bf16.gmra.mrb[0].mxu0 %v1130
        %v1169 = vpop.f32.mrb[0].mxu0
        %v1170 = vadd.f32 0.0, %v1169
        %v1171 = vpop.f32.mrb[0].mxu0
        %v1172 = vpop.f32.mrb[0].mxu0
        %v1173 = vpop.f32.mrb[0].mxu0
        %1174 = vdwg.mxu0
        %v1175 = vadd.f32 %v1170, %v787
        %v1176 = vsel %vm795, %v1175, -inf
        %1177 = vmax.xlane.f32.xlu0 %v1176
        %v1178 = vpop.xlane.xlu0 %1177
        %v1179 = vsub.f32 %v1175, %v1178
        %v1180 = vmul.f32 %v1179, 1.442695
        %v1181 = vpow.pop %v1180
        %v1182 = vsel %vm795, %v1181, 0.0
        %1183 = vadd.xlane.f32.xlu0 %v1182
        %v1184 = vpop.xlane.xlu0 %1183
        %v1185 = vrcp.pop %v1184
        %v1186 = vmul.f32 %v1181, %v1185
        %v1187 = vsel %vm795, %v1186, 0.0
        %1188 = vadd.xlane.f32.xlu0 %v1187
        %v1189 = vpop.xlane.xlu0 %1188
        %1191 = vrot.lane.b32.xlu0 %v1186, 1
        %v1192 = vpop.permute.xlu0 %1191
        %v1194 = vsel %vm861, 0.0, %v1192
        %v1195 = vadd.f32 %v1186, %v1194
        %1197 = vrot.lane.b32.xlu0 %v1195, 2
        %v1198 = vpop.permute.xlu0 %1197
        %v1200 = vsel %vm868, 0.0, %v1198
        %v1201 = vadd.f32 %v1195, %v1200
        %1203 = vrot.lane.b32.xlu0 %v1201, 4
        %v1204 = vpop.permute.xlu0 %1203
        %v1206 = vsel %vm875, 0.0, %v1204
        %v1207 = vadd.f32 %v1201, %v1206
        %v1208 = vsub.f32 %v1189, %v1207
        %v1209 = vmul.f32 %v1208, %v792
        %v1210 = vmax.f32 %v1209, 0.0
        %v1211 = vrsqrt.pop %v1210
        %v1212 = vmul.f32 %v1210, %v1211
        %vm1213 = vcmp.eq.f32.partialorder %v1210, inf
        %v1214 = vsel %vm1213, %v1210, %v1212
        %vm1215 = vcmp.eq.f32.partialorder %v1210, 0.0
        %v1216 = vand.u32 %v1210, 2147483648
        %v1217 = vsel %vm1215, %v1216, %v1214
        %s1218 = sld [smem:[#allocation4 + $0x2]]
        %v1219 = vstv %s1218
        %v1220 = vmul.f32 %v1217, %v1219
        %v1221 = vmax.f32 %v1220, -11.512925
        %v1222 = vmul.f32 %v1221, 1.442695
        %v1223 = vpow.pop %v1222
        %v1224 = vmul.f32 %v1170, %v1223
        %v1225 = vadd.f32 %v1224, %v787
        %v1226 = vsel %vm795, %v1225, -inf
        %1227 = vmax.xlane.f32.xlu0 %v1226
        %v1228 = vpop.xlane.xlu0 %1227
        %v1229 = vsub.f32 %v1225, %v1228
        %v1230 = vmul.f32 %v1229, 1.442695
        %v1231 = vpow.pop %v1230
        %v1232 = vsel %vm795, %v1231, 0.0
        %1233 = vadd.xlane.f32.xlu0 %v1232
        %v1234 = vpop.xlane.xlu0 %1233
        %v1235 = vrcp.pop %v1234
        %v1236 = vmul.f32 %v1231, %v1235
        %v1237 = vsel %vm786, %v1236, 0.0
        %v1238 = vpack.c.bf16 %v1237, %v1237
        %1239 = vrot.lane.b32.xlu0 %v1076, 112
        %v1240 = vpop.permute.xlu0 %1239
        %v1242 = vsel %vm795, %v1238, 0
        %v1245 = vsel %vm912, %v1240, 0
        %1247 = vmatprep.subr.bf16.mxu0 0
        %1248 = vmatpush1.bf16.msra.mxu0 %v1245
        %1249 = vmatprep.subr.bf16.mxu0 0
        %1250 = vmatpush1.bf16.msra.mxu0 0
        %1251 = vmatprep.subr.bf16.mxu0 0
        %1252 = vmatpush1.bf16.msra.mxu0 0
        %1253 = vmatprep.subr.bf16.mxu0 0
        %1254 = vmatpush1.bf16.msra.mxu0 0
        %1255 = vmatprep.subr.bf16.mxu0 0
        %1256 = vmatpush1.bf16.msra.mxu0 0
        %1257 = vmatprep.subr.bf16.mxu0 0
        %1258 = vmatpush1.bf16.msra.mxu0 0
        %1259 = vmatprep.subr.bf16.mxu0 0
        %1260 = vmatpush1.bf16.msra.mxu0 0
        %1261 = vmatprep.subr.bf16.mxu0 0
        %1262 = vmatpush1.bf16.msra.mxu0 0
        %1263 = vmatprep.subr.bf16.mxu0 0
        %1264 = vmatpush1.bf16.msra.mxu0 0
        %1265 = vmatprep.subr.bf16.mxu0 0
        %1266 = vmatpush1.bf16.msra.mxu0 0
        %1267 = vmatprep.subr.bf16.mxu0 0
        %1268 = vmatpush1.bf16.msra.mxu0 0
        %1269 = vmatprep.subr.bf16.mxu0 0
        %1270 = vmatpush1.bf16.msra.mxu0 0
        %1271 = vmatprep.subr.bf16.mxu0 0
        %1272 = vmatpush1.bf16.msra.mxu0 0
        %1273 = vmatprep.subr.bf16.mxu0 0
        %1274 = vmatpush1.bf16.msra.mxu0 0
        %1275 = vmatprep.subr.bf16.mxu0 0
        %1276 = vmatpush1.bf16.msra.mxu0 0
        %1277 = vmatprep.subr.bf16.mxu0 0
        %1278 = vmatpush1.bf16.msra.mxu0 0
        %1279 = vmatprep.mubr.bf16.mxu0 0
        %1280 = vmatmul.mubr.bf16.gmra.mrb[0].mxu0 %v1242
        %v1281 = vpop.f32.mrb[0].mxu0
        %v1282 = vadd.f32 0.0, %v1281
        %v1283 = vpop.f32.mrb[0].mxu0
        %v1284 = vpop.f32.mrb[0].mxu0
        %v1285 = vpop.f32.mrb[0].mxu0
        %1286 = vdwg.mxu0
        %1287 = vrot.lane.b32.xlu0 %v776, 104
        %v1288 = vpop.permute.xlu0 %1287
        %1289 = vrot.lane.b32.xlu0 %v961, 104
        %v1290 = vpop.permute.xlu0 %1289
        %v1292 = vsel %vm795, %v1288, 0
        %v1295 = vsel %vm795, %v1290, 0
        %1297 = vmatprep.subr.bf16.mxu0 0
        %1298 = vmatpush1.bf16.xpose.msra.mxu0 %v1295
        %1299 = vmatprep.subr.bf16.mxu0 0
        %1300 = vmatpush1.bf16.xpose.msra.mxu0 0
        %1301 = vmatprep.subr.bf16.mxu0 0
        %1302 = vmatpush1.bf16.xpose.msra.mxu0 0
        %1303 = vmatprep.subr.bf16.mxu0 0
        %1304 = vmatpush1.bf16.xpose.msra.mxu0 0
        %1305 = vmatprep.subr.bf16.mxu0 0
        %1306 = vmatpush1.bf16.xpose.msra.mxu0 0
        %1307 = vmatprep.subr.bf16.mxu0 0
        %1308 = vmatpush1.bf16.xpose.msra.mxu0 0
        %1309 = vmatprep.subr.bf16.mxu0 0
        %1310 = vmatpush1.bf16.xpose.msra.mxu0 0
        %1311 = vmatprep.subr.bf16.mxu0 0
        %1312 = vmatpush1.bf16.xpose.msra.mxu0 0
        %1313 = vmatprep.subr.bf16.mxu0 0
        %1314 = vmatpush1.bf16.xpose.msra.mxu0 0
        %1315 = vmatprep.subr.bf16.mxu0 0
        %1316 = vmatpush1.bf16.xpose.msra.mxu0 0
        %1317 = vmatprep.subr.bf16.mxu0 0
        %1318 = vmatpush1.bf16.xpose.msra.mxu0 0
        %1319 = vmatprep.subr.bf16.mxu0 0
        %1320 = vmatpush1.bf16.xpose.msra.mxu0 0
        %1321 = vmatprep.subr.bf16.mxu0 0
        %1322 = vmatpush1.bf16.xpose.msra.mxu0 0
        %1323 = vmatprep.subr.bf16.mxu0 0
        %1324 = vmatpush1.bf16.xpose.msra.mxu0 0
        %1325 = vmatprep.subr.bf16.mxu0 0
        %1326 = vmatpush1.bf16.xpose.msra.mxu0 0
        %1327 = vmatprep.subr.bf16.mxu0 0
        %1328 = vmatpush1.bf16.xpose.msra.mxu0 0
        %1329 = vmatprep.mubr.bf16.mxu0 0
        %1330 = vmatmul.mubr.bf16.gmra.mrb[0].mxu0 %v1292
        %v1331 = vpop.f32.mrb[0].mxu0
        %v1332 = vadd.f32 0.0, %v1331
        %v1333 = vpop.f32.mrb[0].mxu0
        %v1334 = vpop.f32.mrb[0].mxu0
        %v1335 = vpop.f32.mrb[0].mxu0
        %1336 = vdwg.mxu0
        %v1337 = vadd.f32 %v1332, %v787
        %v1338 = vsel %vm795, %v1337, -inf
        %1339 = vmax.xlane.f32.xlu0 %v1338
        %v1340 = vpop.xlane.xlu0 %1339
        %v1341 = vsub.f32 %v1337, %v1340
        %v1342 = vmul.f32 %v1341, 1.442695
        %v1343 = vpow.pop %v1342
        %v1344 = vsel %vm795, %v1343, 0.0
        %1345 = vadd.xlane.f32.xlu0 %v1344
        %v1346 = vpop.xlane.xlu0 %1345
        %v1347 = vrcp.pop %v1346
        %v1348 = vmul.f32 %v1343, %v1347
        %v1349 = vsel %vm795, %v1348, 0.0
        %1350 = vadd.xlane.f32.xlu0 %v1349
        %v1351 = vpop.xlane.xlu0 %1350
        %1353 = vrot.lane.b32.xlu0 %v1348, 1
        %v1354 = vpop.permute.xlu0 %1353
        %v1356 = vsel %vm861, 0.0, %v1354
        %v1357 = vadd.f32 %v1348, %v1356
        %1359 = vrot.lane.b32.xlu0 %v1357, 2
        %v1360 = vpop.permute.xlu0 %1359
        %v1362 = vsel %vm868, 0.0, %v1360
        %v1363 = vadd.f32 %v1357, %v1362
        %1365 = vrot.lane.b32.xlu0 %v1363, 4
        %v1366 = vpop.permute.xlu0 %1365
        %v1368 = vsel %vm875, 0.0, %v1366
        %v1369 = vadd.f32 %v1363, %v1368
        %v1370 = vsub.f32 %v1351, %v1369
        %v1371 = vmul.f32 %v1370, %v792
        %v1372 = vmax.f32 %v1371, 0.0
        %v1373 = vrsqrt.pop %v1372
        %v1374 = vmul.f32 %v1372, %v1373
        %vm1375 = vcmp.eq.f32.partialorder %v1372, inf
        %v1376 = vsel %vm1375, %v1372, %v1374
        %vm1377 = vcmp.eq.f32.partialorder %v1372, 0.0
        %v1378 = vand.u32 %v1372, 2147483648
        %v1379 = vsel %vm1377, %v1378, %v1376
        %s1380 = sld [smem:[#allocation4 + $0x3]]
        %v1381 = vstv %s1380
        %v1382 = vmul.f32 %v1379, %v1381
        %v1383 = vmax.f32 %v1382, -11.512925
        %v1384 = vmul.f32 %v1383, 1.442695
        %v1385 = vpow.pop %v1384
        %v1386 = vmul.f32 %v1332, %v1385
        %v1387 = vadd.f32 %v1386, %v787
        %v1388 = vsel %vm795, %v1387, -inf
        %1389 = vmax.xlane.f32.xlu0 %v1388
        %v1390 = vpop.xlane.xlu0 %1389
        %v1391 = vsub.f32 %v1387, %v1390
        %v1392 = vmul.f32 %v1391, 1.442695
        %v1393 = vpow.pop %v1392
        %v1394 = vsel %vm795, %v1393, 0.0
        %1395 = vadd.xlane.f32.xlu0 %v1394
        %v1396 = vpop.xlane.xlu0 %1395
        %v1397 = vrcp.pop %v1396
        %v1398 = vmul.f32 %v1393, %v1397
        %v1399 = vsel %vm786, %v1398, 0.0
        %v1400 = vpack.c.bf16 %v1399, %v1399
        %1401 = vrot.lane.b32.xlu0 %v1076, 104
        %v1402 = vpop.permute.xlu0 %1401
        %v1404 = vsel %vm795, %v1400, 0
        %v1407 = vsel %vm912, %v1402, 0
        %1409 = vmatprep.subr.bf16.mxu0 0
        %1410 = vmatpush1.bf16.msra.mxu0 %v1407
        %1411 = vmatprep.subr.bf16.mxu0 0
        %1412 = vmatpush1.bf16.msra.mxu0 0
        %1413 = vmatprep.subr.bf16.mxu0 0
        %1414 = vmatpush1.bf16.msra.mxu0 0
        %1415 = vmatprep.subr.bf16.mxu0 0
        %1416 = vmatpush1.bf16.msra.mxu0 0
        %1417 = vmatprep.subr.bf16.mxu0 0
        %1418 = vmatpush1.bf16.msra.mxu0 0
        %1419 = vmatprep.subr.bf16.mxu0 0
        %1420 = vmatpush1.bf16.msra.mxu0 0
        %1421 = vmatprep.subr.bf16.mxu0 0
        %1422 = vmatpush1.bf16.msra.mxu0 0
        %1423 = vmatprep.subr.bf16.mxu0 0
        %1424 = vmatpush1.bf16.msra.mxu0 0
        %1425 = vmatprep.subr.bf16.mxu0 0
        %1426 = vmatpush1.bf16.msra.mxu0 0
        %1427 = vmatprep.subr.bf16.mxu0 0
        %1428 = vmatpush1.bf16.msra.mxu0 0
        %1429 = vmatprep.subr.bf16.mxu0 0
        %1430 = vmatpush1.bf16.msra.mxu0 0
        %1431 = vmatprep.subr.bf16.mxu0 0
        %1432 = vmatpush1.bf16.msra.mxu0 0
        %1433 = vmatprep.subr.bf16.mxu0 0
        %1434 = vmatpush1.bf16.msra.mxu0 0
        %1435 = vmatprep.subr.bf16.mxu0 0
        %1436 = vmatpush1.bf16.msra.mxu0 0
        %1437 = vmatprep.subr.bf16.mxu0 0
        %1438 = vmatpush1.bf16.msra.mxu0 0
        %1439 = vmatprep.subr.bf16.mxu0 0
        %1440 = vmatpush1.bf16.msra.mxu0 0
        %1441 = vmatprep.mubr.bf16.mxu0 0
        %1442 = vmatmul.mubr.bf16.gmra.mrb[0].mxu0 %v1404
        %v1443 = vpop.f32.mrb[0].mxu0
        %v1444 = vadd.f32 0.0, %v1443
        %v1445 = vpop.f32.mrb[0].mxu0
        %v1446 = vpop.f32.mrb[0].mxu0
        %v1447 = vpop.f32.mrb[0].mxu0
        %1448 = vdwg.mxu0
        %1450 = vrot.lane.b32.xlu0 %v1120, 8
        %v1451 = vpop.permute.xlu0 %1450
        %1454 = vrot.lane.b32.xlu0 %v1282, 16
        %v1455 = vpop.permute.xlu0 %1454
        %1458 = vrot.lane.b32.xlu0 %v1444, 24
        %v1459 = vpop.permute.xlu0 %1458
        %v1461 = vsel %vm795, %v951, %v1451
        %vm1462 = vcmask 130048
        %v1463 = vsel %vm1462, %v1461, %v1455
        %vm1464 = vcmask 195584
        %v1465 = vsel %vm1464, %v1463, %v1459
        %v1466 = vpack.c.bf16 %v1465, %v1465
        %v1467 = vld [vmem:[#allocation14] sm:$0xf]
        %v1468 = vld [vmem:[#allocation14 + $0x4] sm:$0xf]
        %v1469 = vld [vmem:[#allocation14 + $0x8] sm:$0xf]
        %v1470 = vld [vmem:[#allocation14 + $0xc] sm:$0xf]
        %v1471 = vld [vmem:[%s9] sm:$0x1]
        %v1473 = vlaneseq
        %v1474 = vshrl.u32 %v1473, 7
        %v1475 = vsub.s32 0, %v1474
        %v1476 = vrot.slane %v1471, %v1475
        %v1482 = vunpack.c.l.b16 %v1467
        %v1483 = vunpack.c.l.b16 %v1468
        %v1484 = vunpack.c.l.b16 %v1469
        %v1485 = vunpack.c.l.b16 %v1470
        %v1486 = vpack.c.b16 %v1483, %v1482
        %v1487 = vpack.c.b16 %v1485, %v1484
        %v1491 = vsel %vm731, %v1466, 0
        %1493 = vmatprep.subr.bf16.mxu0 0
        %1494 = vmatpush1.bf16.msra.mxu0 %v1486
        %1495 = vmatprep.subr.bf16.mxu0 0
        %1496 = vmatpush1.bf16.msra.mxu0 %v1487
        %1497 = vmatprep.subr.bf16.mxu0 0
        %1498 = vmatpush1.bf16.msra.mxu0 0
        %1499 = vmatprep.subr.bf16.mxu0 0
        %1500 = vmatpush1.bf16.msra.mxu0 0
        %1501 = vmatprep.subr.bf16.mxu0 0
        %1502 = vmatpush1.bf16.msra.mxu0 0
        %1503 = vmatprep.subr.bf16.mxu0 0
        %1504 = vmatpush1.bf16.msra.mxu0 0
        %1505 = vmatprep.subr.bf16.mxu0 0
        %1506 = vmatpush1.bf16.msra.mxu0 0
        %1507 = vmatprep.subr.bf16.mxu0 0
        %1508 = vmatpush1.bf16.msra.mxu0 0
        %1509 = vmatprep.subr.bf16.mxu0 0
        %1510 = vmatpush1.bf16.msra.mxu0 0
        %1511 = vmatprep.subr.bf16.mxu0 0
        %1512 = vmatpush1.bf16.msra.mxu0 0
        %1513 = vmatprep.subr.bf16.mxu0 0
        %1514 = vmatpush1.bf16.msra.mxu0 0
        %1515 = vmatprep.subr.bf16.mxu0 0
        %1516 = vmatpush1.bf16.msra.mxu0 0
        %1517 = vmatprep.subr.bf16.mxu0 0
        %1518 = vmatpush1.bf16.msra.mxu0 0
        %1519 = vmatprep.subr.bf16.mxu0 0
        %1520 = vmatpush1.bf16.msra.mxu0 0
        %1521 = vmatprep.subr.bf16.mxu0 0
        %1522 = vmatpush1.bf16.msra.mxu0 0
        %1523 = vmatprep.subr.bf16.mxu0 0
        %1524 = vmatpush1.bf16.msra.mxu0 0
        %1525 = vmatprep.mubr.bf16.mxu0 0
        %1526 = vmatmul.mubr.bf16.gmra.mrb[0].mxu0 %v1491
        %v1527 = vpop.f32.mrb[0].mxu0
        %v1528 = vadd.f32 %v1476, %v1527
        %v1529 = vpop.f32.mrb[0].mxu0
        %v1530 = vpop.f32.mrb[0].mxu0
        %v1531 = vpop.f32.mrb[0].mxu0
        %1532 = vdwg.mxu0
        %v1533 = vadd.f32 %v706, %v1528
        %v1534 = vsel %vm731, %v1533, 0.0
        %1535 = vadd.xlane.f32.xlu0 %v1534
        %v1536 = vpop.xlane.xlu0 %1535
        %v1537 = vrcp.pop 32.0
        %v1538 = vmul.f32 %v1536, %v1537
        %v1539 = vsub.f32 %v1533, %v1538
        %v1540 = vmul.f32 %v1539, %v1539
        %v1541 = vsel %vm731, %v1540, 0.0
        %1542 = vadd.xlane.f32.xlu0 %v1541
        %v1543 = vpop.xlane.xlu0 %1542
        %v1544 = vmul.f32 %v1543, %v1537
        %v1545 = vadd.f32 %v1544, 1e-05
        %v1546 = vrsqrt.pop %v1545
        %v1547 = vmul.f32 %v1539, %v1546
        %v1548 = vld [vmem:[%s10] sm:$0x1]
        %v1550 = vlaneseq
        %v1551 = vshrl.u32 %v1550, 7
        %v1552 = vsub.s32 0, %v1551
        %v1553 = vrot.slane %v1548, %v1552
        %v1555 = vmul.f32 %v1547, %v1553
        %v1556 = vld [vmem:[%s11] sm:$0x1]
        %v1558 = vlaneseq
        %v1559 = vshrl.u32 %v1558, 7
        %v1560 = vsub.s32 0, %v1559
        %v1561 = vrot.slane %v1556, %v1560
        %v1563 = vadd.f32 %v1555, %v1561
        %1564 = vst.msk [vmem:[%s557] sm:$0xff] %vm731, %v1563
        %s1565 = sand.u32 %s325, 1
        %s1566 = scalar_lea.sflag [#allocation6], %s1565
        %s1567 = sand.u32 %s325, 1
        %s1568 = smul.addr %s1567, 8
        %s1569 = scalar_lea.vmem [#allocation15], %s1568
        // Predicated region
        $region97: #{tpu_custom_call.1} parent=67 // pred_check
          %p1570 = pneg %p335
        $region98: #{tpu_custom_call.1} parent=67 // pred_check_branch
          %1572 = sbr.rel (%p1570) target = $region100
        $region99: #{tpu_custom_call.1} parent=67 // pred_region
          %s1574 = ssub.s32 128, 128
          %1575 = vsyncadd %s1566, %s1574
          %s1576 = sadd.s32 %s39, %s38
          %s1577 = smul.addr %s1576, 128
          %s1578 = scalar_lea.hbm %s12, %s1577
          %s1580 = sshll.u32 %s1569, 4
          %s1581 = int_to_ptr.vmem [resolvable:$true] %s1580
          %1583 = dma.vmem_to_hbm [thread:$0]  %s1581, 128, %s1578, %s1566
        $region100: #{tpu_custom_call.1} parent=67 // pred_fallthru
          _
      $region68: #{tpu_custom_call.1} parent=5 // pred_fallthru
        _
      %p1584 = scmp.le.s32.totalorder 2, %s29
      // Predicated region
      $region101: #{tpu_custom_call.1} parent=5 // pred_check
        %p1585 = pneg %p1584
      $region102: #{tpu_custom_call.1} parent=5 // pred_check_branch
        %1587 = sbr.rel (%p1585) target = $region104
      $region103: #{tpu_custom_call.1} parent=5 // pred_region
        %s1588 = ssub.s32 %s29, 2
        // Predicated region
        $region105: #{tpu_custom_call.1} parent=103 // pred_check
          %p1589 = pneg %p341
        $region106: #{tpu_custom_call.1} parent=103 // pred_check_branch
          %1591 = sbr.rel (%p1589) target = $region108
        $region107: #{tpu_custom_call.1} parent=103 // pred_region
          %s1592 = sand.u32 %s326, 1
          %s1593 = scalar_lea.sflag [#allocation6], %s1592
          %s1594 = sand.u32 %s326, 1
          %s1595 = smul.addr %s1594, 8
          %s1596 = scalar_lea.vmem [#allocation15], %s1595
          %1597 = dma.done %s1593, 128
        $region108: #{tpu_custom_call.1} parent=103 // pred_fallthru
          _
      $region104: #{tpu_custom_call.1} parent=5 // pred_fallthru
        _
    $region6: #{tpu_custom_call.1} parent=1 // loop_footer
      %s33 = sadd.s32 1, %s29
    $region7: #{tpu_custom_call.1} parent=1 // loop_footer_branch
      %28 = sbr.rel target = $region3
    $region8: #{tpu_custom_call.1} parent=1 // loop_exit
      _
    %1598 = vsyncpa [#allocation5], 1
    %s1599 = scalar_lea.sflag [#allocation5], 1
    %1600 = vsyncpa %s1599, 1
    %1601 = vsyncpa [#allocation10], 1
    %s1602 = scalar_lea.sflag [#allocation10], 1
    %1603 = vsyncpa %s1602, 1
    %1604 = vsyncpa [#allocation13], 1
    %1605 = vsyncpa [#allocation6], 1
    %s1606 = scalar_lea.sflag [#allocation6], 1
    %1607 = vsyncpa %s1606, 1
    %1608 = vsyncpa [#allocation7], 1
    %s1609 = scalar_lea.sflag [#allocation7], 1
    %1610 = vsyncpa %s1609, 1

</llo_original>
